<compile_context>
chip_gen: v7x
topology: tpu7x:2x2x1
jax: 0.10.0
libtpu: 0.0.40
codegen_flags: <defaults>
</compile_context>

<pallas_src>
import functools

import jax
import jax.numpy as jnp
from jax.experimental import pallas as pl
from jax.experimental.pallas import tpu as pltpu

_LN_EPS = 1e-5  # nn.LayerNorm default


def _cdiv(a, b):
    return -(-a // b)


def _tpu_generation():
    """(mxu_contraction_depth, has_bf16_vpu, tensorcores_per_chip)."""
    try:
        kind = jax.devices()[0].device_kind.lower()
    except Exception:  # pragma: no cover - defensive
        kind = ""
    is_v7 = "v7" in kind
    is_v6 = "v6" in kind
    depth = 256 if (is_v6 or is_v7) else 128     # v5e/older: 128-deep MXU
    bf16_vpu = is_v6 or is_v7                    # v5e has no bf16 VALU
    n_tc = 2 if is_v7 else 1                     # megacore split only on v7x
    return depth, bf16_vpu, n_tc


# ---------------------------------------------------------------------------
# Fused kernel: both SwinTransformerElements, per packed-token tile.
# ---------------------------------------------------------------------------
def fused_basic_layer_kernel(x_ref, y_ref, mavg_ref,
                             wa_ref, ba_ref, w1_ref, b1_ref, w2_ref, b2_ref,
                             o_ref, *, bf16_elem):
    mavg = mavg_ref[...]                        # bf16 (Cp, Cp) segmented-mean
    x = x_ref[...].astype(jnp.float32)          # residual stream, (tp, Cp)
    y = y_ref[...].astype(jnp.float32)

    def ln(v):
        # Per-token LayerNorm in the packed layout: mavg is block-diagonal with
        # (1/C) blocks, so v @ mavg broadcasts each token's channel mean back
        # onto its own C-lane group.  The affine (g, b) is folded into the
        # following weights.  Both statistics dots are explicit bf16 MXU work.
        mu = jnp.dot(v.astype(jnp.bfloat16), mavg,
                     preferred_element_type=jnp.float32)
        d = v - mu
        var = jnp.dot((d * d).astype(jnp.bfloat16), mavg,
                      preferred_element_type=jnp.float32)
        return (d * jax.lax.rsqrt(var + _LN_EPS)).astype(jnp.bfloat16)

    # norm1 is applied to the shared y stream by both blocks; compute it once.
    ny = ln(y)

    for blk in range(2):   # static unroll over the two SwinTransformerElements
        # Attention branch (window_size == 1 -> softmax over one key == 1):
        # exactly proj(v(norm1(y))), folded into a single matmul.
        attn = (jnp.dot(ny, wa_ref[blk], preferred_element_type=jnp.float32)
                + ba_ref[blk])
        x = x + attn
        # MLP branch: norm2 -> fc1 -> GELU(tanh form -> EUP) -> fc2 -> residual.
        nx = ln(x)
        if bf16_elem:
            # bf16 VALU (v6e/v7x): keep the wide (tp, pack*hidden) intermediate
            # in bf16 through the bias-add and GELU.
            h = (jnp.dot(nx, w1_ref[blk],
                         preferred_element_type=jnp.float32).astype(jnp.bfloat16)
                 + b1_ref[blk].astype(jnp.bfloat16))
            h = jax.nn.gelu(h, approximate=True)
        else:
            h = (jnp.dot(nx, w1_ref[blk], preferred_element_type=jnp.float32)
                 + b1_ref[blk])
            h = jax.nn.gelu(h, approximate=True).astype(jnp.bfloat16)
        x = x + (jnp.dot(h, w2_ref[blk], preferred_element_type=jnp.float32)
                 + b2_ref[blk])

    o_ref[...] = x.astype(o_ref.dtype)


# ---------------------------------------------------------------------------
# Parameter folding (exact algebra) + block-diagonal lane packing.
# Hoisted out of the per-call path: call prepare_params() once and reuse.
# ---------------------------------------------------------------------------
def _fold_block_params(p, C, pack):
    wv = p["wkv"][:, C:]          # v-half of kv; k-half is dead code when N == 1
    bv = p["bkv"][:, C:]
    wvp = wv @ p["wp"]            # fold v-proj and output-proj (no nonlinearity)
    bvp = bv @ p["wp"] + p["bp"]
    wa = p["g1"].T * wvp          # fold norm1 affine: diag(g1) @ (Wv Wp)
    ba = p["b1"] @ wvp + bvp
    w1 = p["g2"].T * p["wfc1"]    # fold norm2 affine into fc1
    b1 = p["b2"] @ p["wfc1"] + p["bfc1"]
    w2 = p["wfc2"]
    b2 = p["bfc2"]

    eye = jnp.eye(pack, dtype=jnp.float32)
    bdiag = lambda w: jnp.kron(eye, w).astype(jnp.bfloat16)
    tile = lambda b: jnp.tile(b, (1, pack)).astype(jnp.float32)
    return ((bdiag(wa), tile(ba)), (bdiag(w1), tile(b1)), (bdiag(w2), tile(b2)))


def prepare_params(params, C):
    """Fold / pack / cast weights once.  Returns a dict of device arrays."""
    depth, _, _ = _tpu_generation()
    pack = 1
    for cand in (depth, 128):      # match MXU depth; fall back to 128 lanes
        if C <= cand and cand % C == 0:
            pack = cand // C
            break
    # TODO(synk): when C does not divide 128 we fall back to pack=1 (masked
    # partial stores); a channel-padding path would restore lane density.
    mavg = jnp.kron(jnp.eye(pack, dtype=jnp.float32),
                    jnp.full((C, C), 1.0 / C, dtype=jnp.float32)
                    ).astype(jnp.bfloat16)

    (wa0, ba0), (w10, b10), (w20, b20) = _fold_block_params(params["block0"], C, pack)
    (wa1, ba1), (w11, b11), (w21, b21) = _fold_block_params(params["block1"], C, pack)
    return dict(mavg=mavg,
                wa=jnp.stack([wa0, wa1]), ba=jnp.stack([ba0, ba1]),
                w1=jnp.stack([w10, w11]), b1=jnp.stack([b10, b11]),
                w2=jnp.stack([w20, w21]), b2=jnp.stack([b20, b21]))


def _pick_tiling(Tp, n_tc, max_rows=2048):
    """Choose (tile_rows, grid) for Tp packed rows; pad Tp up to tile*grid."""
    grid = max(n_tc, _cdiv(Tp, max_rows))
    if n_tc > 1 and grid % n_tc != 0:
        grid += n_tc - grid % n_tc           # even split across TensorCores
    tp = max(8, ((_cdiv(Tp, grid) + 7) // 8) * 8)   # sublane-aligned
    grid = _cdiv(Tp, tp)
    if n_tc > 1 and grid % n_tc != 0:
        grid += n_tc - grid % n_tc
    return tp, grid


def basic_layer_forward(x, y, folded):
    """BasicLayer.forward: x_ = block0(x, y); out = block1(x_, y)."""
    B, L, C = x.shape
    T = B * L

    Cp = folded["mavg"].shape[-1]
    pack = Cp // C
    _, bf16_elem, n_tc = _tpu_generation()

    xt = x.reshape(T, C)
    yt = y.reshape(T, C)

    Tp = _cdiv(T, pack)
    tp, grid = _pick_tiling(Tp, n_tc)
    Tp_pad = tp * grid
    T_pad = Tp_pad * pack
    if T_pad != T:
        pad = ((0, T_pad - T), (0, 0))
        xt = jnp.pad(xt, pad)
        yt = jnp.pad(yt, pad)

    # Lane packing: `pack` consecutive tokens per row (Cp = pack*C lanes).
    xp = xt.reshape(Tp_pad, Cp)
    yp = yt.reshape(Tp_pad, Cp)

    tok_spec = pl.BlockSpec((tp, Cp), lambda i: (i, 0))

    def const_spec(a):
        # Constant across the grid: single-buffered, fixed block index.
        return pl.BlockSpec(a.shape, lambda i, _n=a.ndim: (0,) * _n,
                            pipeline_mode=pl.Buffered(1))

    operands = (xp, yp, folded["mavg"], folded["wa"], folded["ba"],
                folded["w1"], folded["b1"], folded["w2"], folded["b2"])
    in_specs = [tok_spec, tok_spec] + [const_spec(a) for a in operands[2:]]

    kernel = functools.partial(fused_basic_layer_kernel, bf16_elem=bf16_elem)
    out = pl.pallas_call(
        kernel,
        out_shape=jax.ShapeDtypeStruct((Tp_pad, Cp), jnp.float32),
        grid_spec=pltpu.PrefetchScalarGridSpec(
            num_scalar_prefetch=0,
            grid=(grid,),
            in_specs=in_specs,
            out_specs=tok_spec,
        ),
        compiler_params=pltpu.CompilerParams(
            dimension_semantics=("parallel",),
            vmem_limit_bytes=32 * 1024 * 1024,
        ),
    )(*operands)

    out = out.reshape(T_pad, C)[:T]
    return out.reshape(B, L, C)


# ---------------------------------------------------------------------------
# Parameter init (PyTorch-shaped, weights stored transposed as (in, out)).
# ---------------------------------------------------------------------------
def init_block_params(key, dim, num_heads, mlp_ratio):
    hidden = int(dim * mlp_ratio)
    ks = jax.random.split(key, 6)

    def lin(k, fan_in, fan_out):
        kw, kb = jax.random.split(k)
        w = jax.random.normal(kw, (fan_in, fan_out), jnp.float32) * 0.02
        b = jax.random.normal(kb, (1, fan_out), jnp.float32) * 0.02
        return w, b

    # q Linear and the relative-position-bias table exist in the module but are
    # mathematically inert for the only runnable configuration (window_size==1,
    # N==1: softmax over a single key == 1).  Created for shape fidelity only.
    wq, bq = lin(ks[0], dim, dim)
    rpb_table = jax.random.normal(ks[5], (1, num_heads), jnp.float32) * 0.02

    wkv, bkv = lin(ks[1], dim, 2 * dim)   # transposed (in, out); cols = [k | v]
    wp, bp = lin(ks[2], dim, dim)
    wfc1, bfc1 = lin(ks[3], dim, hidden)
    wfc2, bfc2 = lin(ks[4], hidden, dim)
    g1 = jnp.ones((1, dim), jnp.float32); b1 = jnp.zeros((1, dim), jnp.float32)
    g2 = jnp.ones((1, dim), jnp.float32); b2 = jnp.zeros((1, dim), jnp.float32)
    return dict(g1=g1, b1=b1, wq=wq, bq=bq, rpb=rpb_table,
                wkv=wkv, bkv=bkv, wp=wp, bp=bp,
                g2=g2, b2=b2, wfc1=wfc1, bfc1=bfc1, wfc2=wfc2, bfc2=bfc2)


# ---------------------------------------------------------------------------
# Pure-JAX f32 reference (unfolded math) for a tolerance check.
# ---------------------------------------------------------------------------
def _ln_ref(v, g, b, eps=_LN_EPS):
    mu = jnp.mean(v, axis=-1, keepdims=True)
    var = jnp.mean((v - mu) ** 2, axis=-1, keepdims=True)
    return (v - mu) * jax.lax.rsqrt(var + eps) * g + b


def _reference_block(x, y, p, C):
    yn = _ln_ref(y, p["g1"], p["b1"])
    v = yn @ p["wkv"][:, C:] + p["bkv"][:, C:]
    attn = v @ p["wp"] + p["bp"]
    x1 = x + attn
    h = jax.nn.gelu(_ln_ref(x1, p["g2"], p["b2"]) @ p["wfc1"] + p["bfc1"],
                    approximate=False)
    return x1 + h @ p["wfc2"] + p["bfc2"]


def reference_forward(x, y, params):
    B, L, C = x.shape
    xt = x.reshape(B * L, C)
    yt = y.reshape(B * L, C)
    x1 = _reference_block(xt, yt, params["block0"], C)
    x2 = _reference_block(x1, yt, params["block1"], C)
    return x2.reshape(B, L, C)


# TODO(synk): the reference forward crashes for window_size > 1 (stride-2 token
# subsampling makes the trailing view(B, H*W, C) shape-inconsistent); only the
# shape-consistent window_size == 1 configuration is implemented here.
# BasicLayer.self.mlp is never called in the reference forward and is omitted.

if __name__ == "__main__":
    key = jax.random.PRNGKey(0)
    B, H, W = 2, 8, 8
    embed_dim, num_heads, window_size, mlp_ratio = 32, 4, 1, 4.0
    L = H * W

    k_x, k_y, k_p0, k_p1 = jax.random.split(key, 4)
    x = jax.random.normal(k_x, (B, L, embed_dim), jnp.float32)
    y = jax.random.normal(k_y, (B, L, embed_dim), jnp.float32)
    params = {
        "block0": init_block_params(k_p0, embed_dim, num_heads, mlp_ratio),
        "block1": init_block_params(k_p1, embed_dim, num_heads, mlp_ratio),
    }

    # Fold / pack / cast weights once, off the per-call hot path.
    folded = prepare_params(params, embed_dim)
    folded = jax.block_until_ready(folded)

    out = jax.jit(basic_layer_forward)(x, y, folded)
    jax.block_until_ready(out)

    assert out.shape == (B, L, embed_dim)
    assert bool(jnp.all(jnp.isfinite(out)))
    ref = reference_forward(x, y, params)
    assert float(jnp.max(jnp.abs(out - ref))) < 5e-2   # bf16-matmul tolerance
    print("KERNEL_OK")
</pallas_src>

<mosaic_0001>
module attributes {stable_mosaic.version = 11 : i64} {
  func.func @fused_basic_layer_kernel(%arg0: i32, %arg1: memref<32x128xf32, #tpu.memory_space<vmem>>, %arg2: memref<32x128xf32, #tpu.memory_space<vmem>>, %arg3: memref<128x128xbf16, #tpu.memory_space<vmem>>, %arg4: memref<2x128x128xbf16, #tpu.memory_space<vmem>>, %arg5: memref<2x1x128xf32, #tpu.memory_space<vmem>>, %arg6: memref<2x128x512xbf16, #tpu.memory_space<vmem>>, %arg7: memref<2x1x512xf32, #tpu.memory_space<vmem>>, %arg8: memref<2x512x128xbf16, #tpu.memory_space<vmem>>, %arg9: memref<2x1x128xf32, #tpu.memory_space<vmem>>, %arg10: memref<32x128xf32, #tpu.memory_space<vmem>>) attributes {dimension_semantics = [#tpu.dimension_semantics<parallel>], iteration_bounds = array<i64: 1>, scalar_prefetch = 0 : i64, scratch_operands = 0 : i64, tpu.core_type = #tpu.core_type<tc>, window_params = [{transform_indices = @transform_0, window_bounds = array<i64: 32, 128>}, {transform_indices = @transform_1, window_bounds = array<i64: 32, 128>}, {pipeline_mode = #tpu.pipeline_mode<synchronous>, transform_indices = @transform_2, window_bounds = array<i64: 128, 128>}, {pipeline_mode = #tpu.pipeline_mode<synchronous>, transform_indices = @transform_3, window_bounds = array<i64: 2, 128, 128>}, {pipeline_mode = #tpu.pipeline_mode<synchronous>, transform_indices = @transform_4, window_bounds = array<i64: 2, 1, 128>}, {pipeline_mode = #tpu.pipeline_mode<synchronous>, transform_indices = @transform_5, window_bounds = array<i64: 2, 128, 512>}, {pipeline_mode = #tpu.pipeline_mode<synchronous>, transform_indices = @transform_6, window_bounds = array<i64: 2, 1, 512>}, {pipeline_mode = #tpu.pipeline_mode<synchronous>, transform_indices = @transform_7, window_bounds = array<i64: 2, 512, 128>}, {pipeline_mode = #tpu.pipeline_mode<synchronous>, transform_indices = @transform_8, window_bounds = array<i64: 2, 1, 128>}, {transform_indices = @transform_9, window_bounds = array<i64: 32, 128>}]} {
    %c0 = arith.constant 0 : index
    %c0_0 = arith.constant 0 : index
    %0 = vector.load %arg3[%c0, %c0_0] : memref<128x128xbf16, #tpu.memory_space<vmem>>, vector<128x128xbf16>
    %c0_1 = arith.constant 0 : index
    %c0_2 = arith.constant 0 : index
    %1 = vector.load %arg1[%c0_1, %c0_2] : memref<32x128xf32, #tpu.memory_space<vmem>>, vector<32x128xf32>
    %c0_3 = arith.constant 0 : index
    %c0_4 = arith.constant 0 : index
    %2 = vector.load %arg2[%c0_3, %c0_4] : memref<32x128xf32, #tpu.memory_space<vmem>>, vector<32x128xf32>
    %3 = arith.truncf %2 : vector<32x128xf32> to vector<32x128xbf16>
    %cst = arith.constant dense<0.000000e+00> : vector<32x128xf32>
    %4 = tpu.matmul %3, %0, %cst {dimension_numbers = #tpu.dot_dimension_numbers<[1], [0], [0], [1], [0, 0, 1, 1], [], []>} : vector<32x128xbf16>, vector<128x128xbf16>, vector<32x128xf32> -> vector<32x128xf32>
    %5 = arith.subf %2, %4 : vector<32x128xf32>
    %6 = arith.mulf %5, %5 : vector<32x128xf32>
    %7 = arith.truncf %6 : vector<32x128xf32> to vector<32x128xbf16>
    %cst_5 = arith.constant dense<0.000000e+00> : vector<32x128xf32>
    %8 = tpu.matmul %7, %0, %cst_5 {dimension_numbers = #tpu.dot_dimension_numbers<[1], [0], [0], [1], [0, 0, 1, 1], [], []>} : vector<32x128xbf16>, vector<128x128xbf16>, vector<32x128xf32> -> vector<32x128xf32>
    %cst_6 = arith.constant 9.99999974E-6 : f32
    %9 = vector.broadcast %cst_6 : f32 to vector<32x128xf32>
    %10 = arith.addf %8, %9 : vector<32x128xf32>
    %11 = math.rsqrt %10 : vector<32x128xf32>
    %12 = arith.mulf %5, %11 : vector<32x128xf32>
    %13 = arith.truncf %12 : vector<32x128xf32> to vector<32x128xbf16>
    %c0_7 = arith.constant 0 : index
    %c0_8 = arith.constant 0 : index
    %c0_9 = arith.constant 0 : index
    %14 = vector.load %arg4[%c0_7, %c0_8, %c0_9] : memref<2x128x128xbf16, #tpu.memory_space<vmem>>, vector<1x128x128xbf16>
    %15 = vector.shape_cast %14 : vector<1x128x128xbf16> to vector<128x128xbf16>
    %cst_10 = arith.constant dense<0.000000e+00> : vector<32x128xf32>
    %16 = tpu.matmul %13, %15, %cst_10 {dimension_numbers = #tpu.dot_dimension_numbers<[1], [0], [0], [1], [0, 0, 1, 1], [], []>} : vector<32x128xbf16>, vector<128x128xbf16>, vector<32x128xf32> -> vector<32x128xf32>
    %c0_11 = arith.constant 0 : index
    %c0_12 = arith.constant 0 : index
    %c0_13 = arith.constant 0 : index
    %17 = vector.load %arg5[%c0_11, %c0_12, %c0_13] : memref<2x1x128xf32, #tpu.memory_space<vmem>>, vector<1x1x128xf32>
    %18 = vector.shape_cast %17 : vector<1x1x128xf32> to vector<1x128xf32>
    %19 = vector.broadcast %18 : vector<1x128xf32> to vector<32x128xf32>
    %20 = arith.addf %16, %19 : vector<32x128xf32>
    %21 = arith.addf %1, %20 : vector<32x128xf32>
    %22 = arith.truncf %21 : vector<32x128xf32> to vector<32x128xbf16>
    %cst_14 = arith.constant dense<0.000000e+00> : vector<32x128xf32>
    %23 = tpu.matmul %22, %0, %cst_14 {dimension_numbers = #tpu.dot_dimension_numbers<[1], [0], [0], [1], [0, 0, 1, 1], [], []>} : vector<32x128xbf16>, vector<128x128xbf16>, vector<32x128xf32> -> vector<32x128xf32>
    %24 = arith.subf %21, %23 : vector<32x128xf32>
    %25 = arith.mulf %24, %24 : vector<32x128xf32>
    %26 = arith.truncf %25 : vector<32x128xf32> to vector<32x128xbf16>
    %cst_15 = arith.constant dense<0.000000e+00> : vector<32x128xf32>
    %27 = tpu.matmul %26, %0, %cst_15 {dimension_numbers = #tpu.dot_dimension_numbers<[1], [0], [0], [1], [0, 0, 1, 1], [], []>} : vector<32x128xbf16>, vector<128x128xbf16>, vector<32x128xf32> -> vector<32x128xf32>
    %cst_16 = arith.constant 9.99999974E-6 : f32
    %28 = vector.broadcast %cst_16 : f32 to vector<32x128xf32>
    %29 = arith.addf %27, %28 : vector<32x128xf32>
    %30 = math.rsqrt %29 : vector<32x128xf32>
    %31 = arith.mulf %24, %30 : vector<32x128xf32>
    %32 = arith.truncf %31 : vector<32x128xf32> to vector<32x128xbf16>
    %c0_17 = arith.constant 0 : index
    %c0_18 = arith.constant 0 : index
    %c0_19 = arith.constant 0 : index
    %33 = vector.load %arg6[%c0_17, %c0_18, %c0_19] : memref<2x128x512xbf16, #tpu.memory_space<vmem>>, vector<1x128x512xbf16>
    %34 = vector.shape_cast %33 : vector<1x128x512xbf16> to vector<128x512xbf16>
    %cst_20 = arith.constant dense<0.000000e+00> : vector<32x512xf32>
    %35 = tpu.matmul %32, %34, %cst_20 {dimension_numbers = #tpu.dot_dimension_numbers<[1], [0], [0], [1], [0, 0, 1, 1], [], []>} : vector<32x128xbf16>, vector<128x512xbf16>, vector<32x512xf32> -> vector<32x512xf32>
    %c0_21 = arith.constant 0 : index
    %c0_22 = arith.constant 0 : index
    %c0_23 = arith.constant 0 : index
    %36 = vector.load %arg7[%c0_21, %c0_22, %c0_23] : memref<2x1x512xf32, #tpu.memory_space<vmem>>, vector<1x1x512xf32>
    %37 = vector.shape_cast %36 : vector<1x1x512xf32> to vector<1x512xf32>
    %38 = vector.broadcast %37 : vector<1x512xf32> to vector<32x512xf32>
    %39 = arith.addf %35, %38 : vector<32x512xf32>
    %40 = arith.mulf %39, %39 : vector<32x512xf32>
    %41 = arith.mulf %39, %40 : vector<32x512xf32>
    %cst_24 = arith.constant 4.471500e-02 : f32
    %42 = vector.broadcast %cst_24 : f32 to vector<32x512xf32>
    %43 = arith.mulf %42, %41 : vector<32x512xf32>
    %44 = arith.addf %39, %43 : vector<32x512xf32>
    %cst_25 = arith.constant 0.797884583 : f32
    %45 = vector.broadcast %cst_25 : f32 to vector<32x512xf32>
    %46 = arith.mulf %45, %44 : vector<32x512xf32>
    %47 = math.tanh %46 : vector<32x512xf32>
    %cst_26 = arith.constant 1.000000e+00 : f32
    %48 = vector.broadcast %cst_26 : f32 to vector<32x512xf32>
    %49 = arith.addf %48, %47 : vector<32x512xf32>
    %cst_27 = arith.constant 5.000000e-01 : f32
    %50 = vector.broadcast %cst_27 : f32 to vector<32x512xf32>
    %51 = arith.mulf %50, %49 : vector<32x512xf32>
    %52 = arith.mulf %39, %51 : vector<32x512xf32>
    %53 = arith.truncf %52 : vector<32x512xf32> to vector<32x512xbf16>
    %c0_28 = arith.constant 0 : index
    %c0_29 = arith.constant 0 : index
    %c0_30 = arith.constant 0 : index
    %54 = vector.load %arg8[%c0_28, %c0_29, %c0_30] : memref<2x512x128xbf16, #tpu.memory_space<vmem>>, vector<1x512x128xbf16>
    %55 = vector.shape_cast %54 : vector<1x512x128xbf16> to vector<512x128xbf16>
    %cst_31 = arith.constant dense<0.000000e+00> : vector<32x128xf32>
    %56 = tpu.matmul %53, %55, %cst_31 {dimension_numbers = #tpu.dot_dimension_numbers<[1], [0], [0], [1], [0, 0, 1, 1], [], []>} : vector<32x512xbf16>, vector<512x128xbf16>, vector<32x128xf32> -> vector<32x128xf32>
    %c0_32 = arith.constant 0 : index
    %c0_33 = arith.constant 0 : index
    %c0_34 = arith.constant 0 : index
    %57 = vector.load %arg9[%c0_32, %c0_33, %c0_34] : memref<2x1x128xf32, #tpu.memory_space<vmem>>, vector<1x1x128xf32>
    %58 = vector.shape_cast %57 : vector<1x1x128xf32> to vector<1x128xf32>
    %59 = vector.broadcast %58 : vector<1x128xf32> to vector<32x128xf32>
    %60 = arith.addf %56, %59 : vector<32x128xf32>
    %61 = arith.addf %21, %60 : vector<32x128xf32>
    %c1 = arith.constant 1 : index
    %c0_35 = arith.constant 0 : index
    %c0_36 = arith.constant 0 : index
    %62 = vector.load %arg4[%c1, %c0_35, %c0_36] : memref<2x128x128xbf16, #tpu.memory_space<vmem>>, vector<1x128x128xbf16>
    %63 = vector.shape_cast %62 : vector<1x128x128xbf16> to vector<128x128xbf16>
    %cst_37 = arith.constant dense<0.000000e+00> : vector<32x128xf32>
    %64 = tpu.matmul %13, %63, %cst_37 {dimension_numbers = #tpu.dot_dimension_numbers<[1], [0], [0], [1], [0, 0, 1, 1], [], []>} : vector<32x128xbf16>, vector<128x128xbf16>, vector<32x128xf32> -> vector<32x128xf32>
    %c1_38 = arith.constant 1 : index
    %c0_39 = arith.constant 0 : index
    %c0_40 = arith.constant 0 : index
    %65 = vector.load %arg5[%c1_38, %c0_39, %c0_40] : memref<2x1x128xf32, #tpu.memory_space<vmem>>, vector<1x1x128xf32>
    %66 = vector.shape_cast %65 : vector<1x1x128xf32> to vector<1x128xf32>
    %67 = vector.broadcast %66 : vector<1x128xf32> to vector<32x128xf32>
    %68 = arith.addf %64, %67 : vector<32x128xf32>
    %69 = arith.addf %61, %68 : vector<32x128xf32>
    %70 = arith.truncf %69 : vector<32x128xf32> to vector<32x128xbf16>
    %cst_41 = arith.constant dense<0.000000e+00> : vector<32x128xf32>
    %71 = tpu.matmul %70, %0, %cst_41 {dimension_numbers = #tpu.dot_dimension_numbers<[1], [0], [0], [1], [0, 0, 1, 1], [], []>} : vector<32x128xbf16>, vector<128x128xbf16>, vector<32x128xf32> -> vector<32x128xf32>
    %72 = arith.subf %69, %71 : vector<32x128xf32>
    %73 = arith.mulf %72, %72 : vector<32x128xf32>
    %74 = arith.truncf %73 : vector<32x128xf32> to vector<32x128xbf16>
    %cst_42 = arith.constant dense<0.000000e+00> : vector<32x128xf32>
    %75 = tpu.matmul %74, %0, %cst_42 {dimension_numbers = #tpu.dot_dimension_numbers<[1], [0], [0], [1], [0, 0, 1, 1], [], []>} : vector<32x128xbf16>, vector<128x128xbf16>, vector<32x128xf32> -> vector<32x128xf32>
    %cst_43 = arith.constant 9.99999974E-6 : f32
    %76 = vector.broadcast %cst_43 : f32 to vector<32x128xf32>
    %77 = arith.addf %75, %76 : vector<32x128xf32>
    %78 = math.rsqrt %77 : vector<32x128xf32>
    %79 = arith.mulf %72, %78 : vector<32x128xf32>
    %80 = arith.truncf %79 : vector<32x128xf32> to vector<32x128xbf16>
    %c1_44 = arith.constant 1 : index
    %c0_45 = arith.constant 0 : index
    %c0_46 = arith.constant 0 : index
    %81 = vector.load %arg6[%c1_44, %c0_45, %c0_46] : memref<2x128x512xbf16, #tpu.memory_space<vmem>>, vector<1x128x512xbf16>
    %82 = vector.shape_cast %81 : vector<1x128x512xbf16> to vector<128x512xbf16>
    %cst_47 = arith.constant dense<0.000000e+00> : vector<32x512xf32>
    %83 = tpu.matmul %80, %82, %cst_47 {dimension_numbers = #tpu.dot_dimension_numbers<[1], [0], [0], [1], [0, 0, 1, 1], [], []>} : vector<32x128xbf16>, vector<128x512xbf16>, vector<32x512xf32> -> vector<32x512xf32>
    %c1_48 = arith.constant 1 : index
    %c0_49 = arith.constant 0 : index
    %c0_50 = arith.constant 0 : index
    %84 = vector.load %arg7[%c1_48, %c0_49, %c0_50] : memref<2x1x512xf32, #tpu.memory_space<vmem>>, vector<1x1x512xf32>
    %85 = vector.shape_cast %84 : vector<1x1x512xf32> to vector<1x512xf32>
    %86 = vector.broadcast %85 : vector<1x512xf32> to vector<32x512xf32>
    %87 = arith.addf %83, %86 : vector<32x512xf32>
    %88 = arith.mulf %87, %87 : vector<32x512xf32>
    %89 = arith.mulf %87, %88 : vector<32x512xf32>
    %cst_51 = arith.constant 4.471500e-02 : f32
    %90 = vector.broadcast %cst_51 : f32 to vector<32x512xf32>
    %91 = arith.mulf %90, %89 : vector<32x512xf32>
    %92 = arith.addf %87, %91 : vector<32x512xf32>
    %cst_52 = arith.constant 0.797884583 : f32
    %93 = vector.broadcast %cst_52 : f32 to vector<32x512xf32>
    %94 = arith.mulf %93, %92 : vector<32x512xf32>
    %95 = math.tanh %94 : vector<32x512xf32>
    %cst_53 = arith.constant 1.000000e+00 : f32
    %96 = vector.broadcast %cst_53 : f32 to vector<32x512xf32>
    %97 = arith.addf %96, %95 : vector<32x512xf32>
    %cst_54 = arith.constant 5.000000e-01 : f32
    %98 = vector.broadcast %cst_54 : f32 to vector<32x512xf32>
    %99 = arith.mulf %98, %97 : vector<32x512xf32>
    %100 = arith.mulf %87, %99 : vector<32x512xf32>
    %101 = arith.truncf %100 : vector<32x512xf32> to vector<32x512xbf16>
    %c1_55 = arith.constant 1 : index
    %c0_56 = arith.constant 0 : index
    %c0_57 = arith.constant 0 : index
    %102 = vector.load %arg8[%c1_55, %c0_56, %c0_57] : memref<2x512x128xbf16, #tpu.memory_space<vmem>>, vector<1x512x128xbf16>
    %103 = vector.shape_cast %102 : vector<1x512x128xbf16> to vector<512x128xbf16>
    %cst_58 = arith.constant dense<0.000000e+00> : vector<32x128xf32>
    %104 = tpu.matmul %101, %103, %cst_58 {dimension_numbers = #tpu.dot_dimension_numbers<[1], [0], [0], [1], [0, 0, 1, 1], [], []>} : vector<32x512xbf16>, vector<512x128xbf16>, vector<32x128xf32> -> vector<32x128xf32>
    %c1_59 = arith.constant 1 : index
    %c0_60 = arith.constant 0 : index
    %c0_61 = arith.constant 0 : index
    %105 = vector.load %arg9[%c1_59, %c0_60, %c0_61] : memref<2x1x128xf32, #tpu.memory_space<vmem>>, vector<1x1x128xf32>
    %106 = vector.shape_cast %105 : vector<1x1x128xf32> to vector<1x128xf32>
    %107 = vector.broadcast %106 : vector<1x128xf32> to vector<32x128xf32>
    %108 = arith.addf %104, %107 : vector<32x128xf32>
    %109 = arith.addf %69, %108 : vector<32x128xf32>
    %c0_62 = arith.constant 0 : index
    %c0_63 = arith.constant 0 : index
    %110 = vector.load %arg10[%c0_62, %c0_63] : memref<32x128xf32, #tpu.memory_space<vmem>>, vector<32x128xf32>
    tpu.vector_store %arg10[%c0_62, %c0_63], %109 {strides = array<i32>} : memref<32x128xf32, #tpu.memory_space<vmem>>, vector<32x128xf32>,
    return
  }
  func.func @transform_0(%arg0: i32) -> (i32, i32) {
    %c0_i32 = arith.constant 0 : i32
    %c0_i32_0 = arith.constant 0 : i32
    return %arg0, %c0_i32 : i32, i32
  }
  func.func @transform_1(%arg0: i32) -> (i32, i32) {
    %c0_i32 = arith.constant 0 : i32
    %c0_i32_0 = arith.constant 0 : i32
    return %arg0, %c0_i32 : i32, i32
  }
  func.func @transform_2(%arg0: i32) -> (i32, i32) {
    %c0_i32 = arith.constant 0 : i32
    %c0_i32_0 = arith.constant 0 : i32
    %c0_i32_1 = arith.constant 0 : i32
    return %c0_i32, %c0_i32_0 : i32, i32
  }
  func.func @transform_3(%arg0: i32) -> (i32, i32, i32) {
    %c0_i32 = arith.constant 0 : i32
    %c0_i32_0 = arith.constant 0 : i32
    %c0_i32_1 = arith.constant 0 : i32
    %c0_i32_2 = arith.constant 0 : i32
    return %c0_i32, %c0_i32_0, %c0_i32_1 : i32, i32, i32
  }
  func.func @transform_4(%arg0: i32) -> (i32, i32, i32) {
    %c0_i32 = arith.constant 0 : i32
    %c0_i32_0 = arith.constant 0 : i32
    %c0_i32_1 = arith.constant 0 : i32
    %c0_i32_2 = arith.constant 0 : i32
    return %c0_i32, %c0_i32_0, %c0_i32_1 : i32, i32, i32
  }
  func.func @transform_5(%arg0: i32) -> (i32, i32, i32) {
    %c0_i32 = arith.constant 0 : i32
    %c0_i32_0 = arith.constant 0 : i32
    %c0_i32_1 = arith.constant 0 : i32
    %c0_i32_2 = arith.constant 0 : i32
    return %c0_i32, %c0_i32_0, %c0_i32_1 : i32, i32, i32
  }
  func.func @transform_6(%arg0: i32) -> (i32, i32, i32) {
    %c0_i32 = arith.constant 0 : i32
    %c0_i32_0 = arith.constant 0 : i32
    %c0_i32_1 = arith.constant 0 : i32
    %c0_i32_2 = arith.constant 0 : i32
    return %c0_i32, %c0_i32_0, %c0_i32_1 : i32, i32, i32
  }
  func.func @transform_7(%arg0: i32) -> (i32, i32, i32) {
    %c0_i32 = arith.constant 0 : i32
    %c0_i32_0 = arith.constant 0 : i32
    %c0_i32_1 = arith.constant 0 : i32
    %c0_i32_2 = arith.constant 0 : i32
    return %c0_i32, %c0_i32_0, %c0_i32_1 : i32, i32, i32
  }
  func.func @transform_8(%arg0: i32) -> (i32, i32, i32) {
    %c0_i32 = arith.constant 0 : i32
    %c0_i32_0 = arith.constant 0 : i32
    %c0_i32_1 = arith.constant 0 : i32
    %c0_i32_2 = arith.constant 0 : i32
    return %c0_i32, %c0_i32_0, %c0_i32_1 : i32, i32, i32
  }
  func.func @transform_9(%arg0: i32) -> (i32, i32) {
    %c0_i32 = arith.constant 0 : i32
    %c0_i32_0 = arith.constant 0 : i32
    return %arg0, %c0_i32 : i32, i32
  }
}

</mosaic_0001>

<llo_original>
// kernel: basic_layer_forward.1
$region0: #{basic_layer_forward.1}
  #allocation0 [shape = 'u32[]', space=smem, size = 0x4, offset = 0x4, fixed_abs, tag = 'smem constant byte address 0x4 - core index']
  #allocation1 [shape = 'u32[144,128]{1,0:T(1,128)}', space=vmem, size = 0x12000, scoped, tag = 'internal scratch']
  %s0 = inlined_call_operand.vmem [shape: f32[32,128], index: 0, kind: input, shape index: {}]
  %s1 = inlined_call_operand.vmem [shape: f32[32,128], index: 1, kind: input, shape index: {}]
  %s2 = inlined_call_operand.vmem [shape: bf16[128,128], index: 2, kind: input, shape index: {}]
  %s3 = inlined_call_operand.vmem [shape: bf16[2,128,128], index: 3, kind: input, shape index: {}]
  %s4 = inlined_call_operand.vmem [shape: f32[2,1,128], index: 4, kind: input, shape index: {}]
  %s5 = inlined_call_operand.vmem [shape: bf16[2,128,512], index: 5, kind: input, shape index: {}]
  %s6 = inlined_call_operand.vmem [shape: f32[2,1,512], index: 6, kind: input, shape index: {}]
  %s7 = inlined_call_operand.hbm [shape: bf16[2,512,128], index: 7, kind: input, shape index: {}]
  %s8 = inlined_call_operand.vmem [shape: f32[2,1,128], index: 8, kind: input, shape index: {}]
  %s9 = inlined_call_operand.vmem [shape: f32[32,128], index: 9, kind: output, shape index: {}]
  %s10 = sld [smem:[#allocation0]]
  $region50: #{basic_layer_forward.1} parent=0
    _
  %s12 = ssub.s32 1, %s10
  %s13 = scalar_select 0, %s12, %s10
  $region1: #{basic_layer_forward.1} parent=0
    #allocation2 [shape = 'u8[262144]{0}', space=vmem, size = 0x40000, scoped, tag = 'input window, operand 7, single buffered']
    #allocation3 [shape = 's32[1]{0}', space=sflag, size = 0x4, scoped, tag = 'scoped memory for basic_layer_forward.1']
    %14 = vsyncpa [#allocation3], 0
    // Predicated region
    $region2: #{basic_layer_forward.1} parent=1 // pred_check
      _
    $region3: #{basic_layer_forward.1} parent=1 // pred_check_branch
      %16 = sbr.rel (0) target = $region5
    $region4: #{basic_layer_forward.1} parent=1 // pred_region
      _
    $region5: #{basic_layer_forward.1} parent=1 // pred_fallthru
      _
    // Predicated region
    $region6: #{basic_layer_forward.1} parent=1 // pred_check
      _
    $region7: #{basic_layer_forward.1} parent=1 // pred_check_branch
      %18 = sbr.rel (0) target = $region9
    $region8: #{basic_layer_forward.1} parent=1 // pred_region
      _
    $region9: #{basic_layer_forward.1} parent=1 // pred_fallthru
      _
    // Predicated region
    $region10: #{basic_layer_forward.1} parent=1 // pred_check
      _
    $region11: #{basic_layer_forward.1} parent=1 // pred_check_branch
      %20 = sbr.rel (0) target = $region13
    $region12: #{basic_layer_forward.1} parent=1 // pred_region
      _
    $region13: #{basic_layer_forward.1} parent=1 // pred_fallthru
      _
    // Predicated region
    $region14: #{basic_layer_forward.1} parent=1 // pred_check
      _
    $region15: #{basic_layer_forward.1} parent=1 // pred_check_branch
      %22 = sbr.rel (0) target = $region17
    $region16: #{basic_layer_forward.1} parent=1 // pred_region
      _
    $region17: #{basic_layer_forward.1} parent=1 // pred_fallthru
      _
    // Predicated region
    $region18: #{basic_layer_forward.1} parent=1 // pred_check
      _
    $region19: #{basic_layer_forward.1} parent=1 // pred_check_branch
      %24 = sbr.rel (0) target = $region21
    $region20: #{basic_layer_forward.1} parent=1 // pred_region
      _
    $region21: #{basic_layer_forward.1} parent=1 // pred_fallthru
      _
    // Predicated region
    $region22: #{basic_layer_forward.1} parent=1 // pred_check
      _
    $region23: #{basic_layer_forward.1} parent=1 // pred_check_branch
      %26 = sbr.rel (0) target = $region25
    $region24: #{basic_layer_forward.1} parent=1 // pred_region
      _
    $region25: #{basic_layer_forward.1} parent=1 // pred_fallthru
      _
    // Predicated region
    $region26: #{basic_layer_forward.1} parent=1 // pred_check
      _
    $region27: #{basic_layer_forward.1} parent=1 // pred_check_branch
      %28 = sbr.rel (0) target = $region29
    $region28: #{basic_layer_forward.1} parent=1 // pred_region
      _
    $region29: #{basic_layer_forward.1} parent=1 // pred_fallthru
      _
    // Predicated region
    $region30: #{basic_layer_forward.1} parent=1 // pred_check
      _
    $region31: #{basic_layer_forward.1} parent=1 // pred_check_branch
      %30 = sbr.rel (0) target = $region33
    $region32: #{basic_layer_forward.1} parent=1 // pred_region
      %s32 = ssub.s32 8192, 8192
      %33 = vsyncadd [#allocation3], %s32
      %s34 = sshll.u32 [#allocation2], 4
      %s35 = int_to_ptr.vmem [resolvable:$true] %s34
      %40 = dma.hbm_to_vmem [thread:$0]  %s7, 8192, %s35, [#allocation3], 64, 64, 4
    $region33: #{basic_layer_forward.1} parent=1 // pred_fallthru
      _
    // Predicated region
    $region34: #{basic_layer_forward.1} parent=1 // pred_check
      _
    $region35: #{basic_layer_forward.1} parent=1 // pred_check_branch
      %42 = sbr.rel (0) target = $region37
    $region36: #{basic_layer_forward.1} parent=1 // pred_region
      _
    $region37: #{basic_layer_forward.1} parent=1 // pred_fallthru
      _
    // Predicated region
    $region38: #{basic_layer_forward.1} parent=1 // pred_check
      _
    $region39: #{basic_layer_forward.1} parent=1 // pred_check_branch
      %44 = sbr.rel (0) target = $region41
    $region40: #{basic_layer_forward.1} parent=1 // pred_region
      %45 = dma.done [#allocation3], 8192
    $region41: #{basic_layer_forward.1} parent=1 // pred_fallthru
      _
    %v47 = vld [vmem:[%s2] sm:$0xf]
    %v48 = vld [vmem:[%s2 + $0x4] sm:$0xf]
    %v49 = vld [vmem:[%s2 + $0x8] sm:$0xf]
    %v50 = vld [vmem:[%s2 + $0xc] sm:$0xf]
    %v51 = vld [vmem:[%s2 + $0x10] sm:$0xf]
    %v52 = vld [vmem:[%s2 + $0x14] sm:$0xf]
    %v53 = vld [vmem:[%s2 + $0x18] sm:$0xf]
    %v54 = vld [vmem:[%s2 + $0x1c] sm:$0xf]
    %v55 = vld [vmem:[%s2 + $0x20] sm:$0xf]
    %v56 = vld [vmem:[%s2 + $0x24] sm:$0xf]
    %v57 = vld [vmem:[%s2 + $0x28] sm:$0xf]
    %v58 = vld [vmem:[%s2 + $0x2c] sm:$0xf]
    %v59 = vld [vmem:[%s2 + $0x30] sm:$0xf]
    %v60 = vld [vmem:[%s2 + $0x34] sm:$0xf]
    %v61 = vld [vmem:[%s2 + $0x38] sm:$0xf]
    %v62 = vld [vmem:[%s2 + $0x3c] sm:$0xf]
    %v63 = vld [vmem:[%s0] sm:$0xff]
    %v64 = vld [vmem:[%s0 + $0x8] sm:$0xff]
    %v65 = vld [vmem:[%s0 + $0x10] sm:$0xff]
    %v66 = vld [vmem:[%s0 + $0x18] sm:$0xff]
    %v67 = vld [vmem:[%s1] sm:$0xff]
    %v68 = vld [vmem:[%s1 + $0x8] sm:$0xff]
    %v69 = vld [vmem:[%s1 + $0x10] sm:$0xff]
    %v70 = vld [vmem:[%s1 + $0x18] sm:$0xff]
    %v71 = vpack.c.bf16 %v68, %v67
    %v72 = vpack.c.bf16 %v70, %v69
    %v89 = vunpack.c.l.b16 %v47
    %v90 = vunpack.c.l.b16 %v48
    %v91 = vunpack.c.l.b16 %v49
    %v92 = vunpack.c.l.b16 %v50
    %v93 = vunpack.c.l.b16 %v51
    %v94 = vunpack.c.l.b16 %v52
    %v95 = vunpack.c.l.b16 %v53
    %v96 = vunpack.c.l.b16 %v54
    %v97 = vunpack.c.l.b16 %v55
    %v98 = vunpack.c.l.b16 %v56
    %v99 = vunpack.c.l.b16 %v57
    %v100 = vunpack.c.l.b16 %v58
    %v101 = vunpack.c.l.b16 %v59
    %v102 = vunpack.c.l.b16 %v60
    %v103 = vunpack.c.l.b16 %v61
    %v104 = vunpack.c.l.b16 %v62
    %v105 = vpack.c.b16 %v90, %v89
    %v106 = vpack.c.b16 %v92, %v91
    %v107 = vpack.c.b16 %v94, %v93
    %v108 = vpack.c.b16 %v96, %v95
    %v109 = vpack.c.b16 %v98, %v97
    %v110 = vpack.c.b16 %v100, %v99
    %v111 = vpack.c.b16 %v102, %v101
    %v112 = vpack.c.b16 %v104, %v103
    %121 = vmatprep.subr.bf16.mxu0 0
    %122 = vmatpush1.bf16.msra.mxu0 %v105
    %123 = vmatprep.subr.bf16.mxu0 0
    %124 = vmatpush1.bf16.msra.mxu0 %v106
    %125 = vmatprep.subr.bf16.mxu0 0
    %126 = vmatpush1.bf16.msra.mxu0 %v107
    %127 = vmatprep.subr.bf16.mxu0 0
    %128 = vmatpush1.bf16.msra.mxu0 %v108
    %129 = vmatprep.subr.bf16.mxu0 0
    %130 = vmatpush1.bf16.msra.mxu0 %v109
    %131 = vmatprep.subr.bf16.mxu0 0
    %132 = vmatpush1.bf16.msra.mxu0 %v110
    %133 = vmatprep.subr.bf16.mxu0 0
    %134 = vmatpush1.bf16.msra.mxu0 %v111
    %135 = vmatprep.subr.bf16.mxu0 0
    %136 = vmatpush1.bf16.msra.mxu0 %v112
    %137 = vmatprep.subr.bf16.mxu0 0
    %138 = vmatpush1.bf16.msra.mxu0 0
    %139 = vmatprep.subr.bf16.mxu0 0
    %140 = vmatpush1.bf16.msra.mxu0 0
    %141 = vmatprep.subr.bf16.mxu0 0
    %142 = vmatpush1.bf16.msra.mxu0 0
    %143 = vmatprep.subr.bf16.mxu0 0
    %144 = vmatpush1.bf16.msra.mxu0 0
    %145 = vmatprep.subr.bf16.mxu0 0
    %146 = vmatpush1.bf16.msra.mxu0 0
    %147 = vmatprep.subr.bf16.mxu0 0
    %148 = vmatpush1.bf16.msra.mxu0 0
    %149 = vmatprep.subr.bf16.mxu0 0
    %150 = vmatpush1.bf16.msra.mxu0 0
    %151 = vmatprep.subr.bf16.mxu0 0
    %152 = vmatpush1.bf16.msra.mxu0 0
    %153 = vmatprep.mubr.bf16.mxu0 0
    %154 = vmatmul.mubr.bf16.gmra.mrb[0].mxu0 %v71
    %v155 = vpop.f32.mrb[0].mxu0
    %v156 = vadd.f32 0.0, %v155
    %v157 = vpop.f32.mrb[0].mxu0
    %v158 = vpop.f32.mrb[0].mxu0
    %v159 = vadd.f32 0.0, %v158
    %v160 = vpop.f32.mrb[0].mxu0
    %161 = vmatprep.mubr.bf16.mxu0 0
    %162 = vmatmul.mubr.bf16.gmra.mrb[0].mxu0 %v72
    %v163 = vpop.f32.mrb[0].mxu0
    %v164 = vadd.f32 0.0, %v163
    %v165 = vpop.f32.mrb[0].mxu0
    %v166 = vpop.f32.mrb[0].mxu0
    %v167 = vadd.f32 0.0, %v166
    %v168 = vpop.f32.mrb[0].mxu0
    %169 = vdwg.mxu0
    %v170 = vsub.f32 %v67, %v156
    %v171 = vsub.f32 %v68, %v159
    %v172 = vsub.f32 %v69, %v164
    %v173 = vsub.f32 %v70, %v167
    %v174 = vmul.f32 %v170, %v170
    %v175 = vmul.f32 %v171, %v171
    %v176 = vmul.f32 %v172, %v172
    %v177 = vmul.f32 %v173, %v173
    %v178 = vpack.c.bf16 %v175, %v174
    %v179 = vpack.c.bf16 %v177, %v176
    %180 = vmatprep.subr.bf16.mxu0 0
    %181 = vmatpush1.bf16.msra.mxu0 %v105
    %182 = vmatprep.subr.bf16.mxu0 0
    %183 = vmatpush1.bf16.msra.mxu0 %v106
    %184 = vmatprep.subr.bf16.mxu0 0
    %185 = vmatpush1.bf16.msra.mxu0 %v107
    %186 = vmatprep.subr.bf16.mxu0 0
    %187 = vmatpush1.bf16.msra.mxu0 %v108
    %188 = vmatprep.subr.bf16.mxu0 0
    %189 = vmatpush1.bf16.msra.mxu0 %v109
    %190 = vmatprep.subr.bf16.mxu0 0
    %191 = vmatpush1.bf16.msra.mxu0 %v110
    %192 = vmatprep.subr.bf16.mxu0 0
    %193 = vmatpush1.bf16.msra.mxu0 %v111
    %194 = vmatprep.subr.bf16.mxu0 0
    %195 = vmatpush1.bf16.msra.mxu0 %v112
    %196 = vmatprep.subr.bf16.mxu0 0
    %197 = vmatpush1.bf16.msra.mxu0 0
    %198 = vmatprep.subr.bf16.mxu0 0
    %199 = vmatpush1.bf16.msra.mxu0 0
    %200 = vmatprep.subr.bf16.mxu0 0
    %201 = vmatpush1.bf16.msra.mxu0 0
    %202 = vmatprep.subr.bf16.mxu0 0
    %203 = vmatpush1.bf16.msra.mxu0 0
    %204 = vmatprep.subr.bf16.mxu0 0
    %205 = vmatpush1.bf16.msra.mxu0 0
    %206 = vmatprep.subr.bf16.mxu0 0
    %207 = vmatpush1.bf16.msra.mxu0 0
    %208 = vmatprep.subr.bf16.mxu0 0
    %209 = vmatpush1.bf16.msra.mxu0 0
    %210 = vmatprep.subr.bf16.mxu0 0
    %211 = vmatpush1.bf16.msra.mxu0 0
    %212 = vmatprep.mubr.bf16.mxu0 0
    %213 = vmatmul.mubr.bf16.gmra.mrb[0].mxu0 %v178
    %v214 = vpop.f32.mrb[0].mxu0
    %v215 = vadd.f32 1e-05, %v214
    %v216 = vpop.f32.mrb[0].mxu0
    %v217 = vpop.f32.mrb[0].mxu0
    %v218 = vadd.f32 1e-05, %v217
    %v219 = vpop.f32.mrb[0].mxu0
    %220 = vmatprep.mubr.bf16.mxu0 0
    %221 = vmatmul.mubr.bf16.gmra.mrb[0].mxu0 %v179
    %v222 = vpop.f32.mrb[0].mxu0
    %v223 = vadd.f32 1e-05, %v222
    %v224 = vpop.f32.mrb[0].mxu0
    %v225 = vpop.f32.mrb[0].mxu0
    %v226 = vadd.f32 1e-05, %v225
    %v227 = vpop.f32.mrb[0].mxu0
    %228 = vdwg.mxu0
    %v229 = vrsqrt.pop %v215
    %v230 = vrsqrt.pop %v218
    %v231 = vrsqrt.pop %v223
    %v232 = vrsqrt.pop %v226
    %v233 = vmul.f32 %v170, %v229
    %v234 = vmul.f32 %v171, %v230
    %v235 = vmul.f32 %v172, %v231
    %v236 = vmul.f32 %v173, %v232
    %v237 = vpack.c.bf16 %v234, %v233
    %v238 = vpack.c.bf16 %v236, %v235
    %v239 = vld [vmem:[%s3] sm:$0xf]
    %v240 = vld [vmem:[%s3 + $0x4] sm:$0xf]
    %v241 = vld [vmem:[%s3 + $0x8] sm:$0xf]
    %v242 = vld [vmem:[%s3 + $0xc] sm:$0xf]
    %v243 = vld [vmem:[%s3 + $0x10] sm:$0xf]
    %v244 = vld [vmem:[%s3 + $0x14] sm:$0xf]
    %v245 = vld [vmem:[%s3 + $0x18] sm:$0xf]
    %v246 = vld [vmem:[%s3 + $0x1c] sm:$0xf]
    %v247 = vld [vmem:[%s3 + $0x20] sm:$0xf]
    %v248 = vld [vmem:[%s3 + $0x24] sm:$0xf]
    %v249 = vld [vmem:[%s3 + $0x28] sm:$0xf]
    %v250 = vld [vmem:[%s3 + $0x2c] sm:$0xf]
    %v251 = vld [vmem:[%s3 + $0x30] sm:$0xf]
    %v252 = vld [vmem:[%s3 + $0x34] sm:$0xf]
    %v253 = vld [vmem:[%s3 + $0x38] sm:$0xf]
    %v254 = vld [vmem:[%s3 + $0x3c] sm:$0xf]
    %v255 = vld [vmem:[%s4] sm:$0x1]
    %v257 = vlaneseq
    %v258 = vshrl.u32 %v257, 7
    %v259 = vsub.s32 0, %v258
    %v260 = vrot.slane %v255, %v259
    %v278 = vunpack.c.l.b16 %v239
    %v279 = vunpack.c.l.b16 %v240
    %v280 = vunpack.c.l.b16 %v241
    %v281 = vunpack.c.l.b16 %v242
    %v282 = vunpack.c.l.b16 %v243
    %v283 = vunpack.c.l.b16 %v244
    %v284 = vunpack.c.l.b16 %v245
    %v285 = vunpack.c.l.b16 %v246
    %v286 = vunpack.c.l.b16 %v247
    %v287 = vunpack.c.l.b16 %v248
    %v288 = vunpack.c.l.b16 %v249
    %v289 = vunpack.c.l.b16 %v250
    %v290 = vunpack.c.l.b16 %v251
    %v291 = vunpack.c.l.b16 %v252
    %v292 = vunpack.c.l.b16 %v253
    %v293 = vunpack.c.l.b16 %v254
    %v294 = vpack.c.b16 %v279, %v278
    %v295 = vpack.c.b16 %v281, %v280
    %v296 = vpack.c.b16 %v283, %v282
    %v297 = vpack.c.b16 %v285, %v284
    %v298 = vpack.c.b16 %v287, %v286
    %v299 = vpack.c.b16 %v289, %v288
    %v300 = vpack.c.b16 %v291, %v290
    %v301 = vpack.c.b16 %v293, %v292
    %310 = vmatprep.subr.bf16.mxu0 0
    %311 = vmatpush1.bf16.msra.mxu0 %v294
    %312 = vmatprep.subr.bf16.mxu0 0
    %313 = vmatpush1.bf16.msra.mxu0 %v295
    %314 = vmatprep.subr.bf16.mxu0 0
    %315 = vmatpush1.bf16.msra.mxu0 %v296
    %316 = vmatprep.subr.bf16.mxu0 0
    %317 = vmatpush1.bf16.msra.mxu0 %v297
    %318 = vmatprep.subr.bf16.mxu0 0
    %319 = vmatpush1.bf16.msra.mxu0 %v298
    %320 = vmatprep.subr.bf16.mxu0 0
    %321 = vmatpush1.bf16.msra.mxu0 %v299
    %322 = vmatprep.subr.bf16.mxu0 0
    %323 = vmatpush1.bf16.msra.mxu0 %v300
    %324 = vmatprep.subr.bf16.mxu0 0
    %325 = vmatpush1.bf16.msra.mxu0 %v301
    %326 = vmatprep.subr.bf16.mxu0 0
    %327 = vmatpush1.bf16.msra.mxu0 0
    %328 = vmatprep.subr.bf16.mxu0 0
    %329 = vmatpush1.bf16.msra.mxu0 0
    %330 = vmatprep.subr.bf16.mxu0 0
    %331 = vmatpush1.bf16.msra.mxu0 0
    %332 = vmatprep.subr.bf16.mxu0 0
    %333 = vmatpush1.bf16.msra.mxu0 0
    %334 = vmatprep.subr.bf16.mxu0 0
    %335 = vmatpush1.bf16.msra.mxu0 0
    %336 = vmatprep.subr.bf16.mxu0 0
    %337 = vmatpush1.bf16.msra.mxu0 0
    %338 = vmatprep.subr.bf16.mxu0 0
    %339 = vmatpush1.bf16.msra.mxu0 0
    %340 = vmatprep.subr.bf16.mxu0 0
    %341 = vmatpush1.bf16.msra.mxu0 0
    %342 = vmatprep.mubr.bf16.mxu0 0
    %343 = vmatmul.mubr.bf16.gmra.mrb[0].mxu0 %v237
    %v344 = vpop.f32.mrb[0].mxu0
    %v345 = vadd.f32 %v260, %v344
    %v346 = vpop.f32.mrb[0].mxu0
    %v347 = vpop.f32.mrb[0].mxu0
    %v348 = vadd.f32 %v260, %v347
    %v349 = vpop.f32.mrb[0].mxu0
    %350 = vmatprep.mubr.bf16.mxu0 0
    %351 = vmatmul.mubr.bf16.gmra.mrb[0].mxu0 %v238
    %v352 = vpop.f32.mrb[0].mxu0
    %v353 = vadd.f32 %v260, %v352
    %v354 = vpop.f32.mrb[0].mxu0
    %v355 = vpop.f32.mrb[0].mxu0
    %v356 = vadd.f32 %v260, %v355
    %v357 = vpop.f32.mrb[0].mxu0
    %358 = vdwg.mxu0
    %v359 = vadd.f32 %v63, %v345
    %v360 = vadd.f32 %v64, %v348
    %v361 = vadd.f32 %v65, %v353
    %v362 = vadd.f32 %v66, %v356
    %v363 = vpack.c.bf16 %v360, %v359
    %v364 = vpack.c.bf16 %v362, %v361
    %365 = vmatprep.subr.bf16.mxu0 0
    %366 = vmatpush1.bf16.msra.mxu0 %v105
    %367 = vmatprep.subr.bf16.mxu0 0
    %368 = vmatpush1.bf16.msra.mxu0 %v106
    %369 = vmatprep.subr.bf16.mxu0 0
    %370 = vmatpush1.bf16.msra.mxu0 %v107
    %371 = vmatprep.subr.bf16.mxu0 0
    %372 = vmatpush1.bf16.msra.mxu0 %v108
    %373 = vmatprep.subr.bf16.mxu0 0
    %374 = vmatpush1.bf16.msra.mxu0 %v109
    %375 = vmatprep.subr.bf16.mxu0 0
    %376 = vmatpush1.bf16.msra.mxu0 %v110
    %377 = vmatprep.subr.bf16.mxu0 0
    %378 = vmatpush1.bf16.msra.mxu0 %v111
    %379 = vmatprep.subr.bf16.mxu0 0
    %380 = vmatpush1.bf16.msra.mxu0 %v112
    %381 = vmatprep.subr.bf16.mxu0 0
    %382 = vmatpush1.bf16.msra.mxu0 0
    %383 = vmatprep.subr.bf16.mxu0 0
    %384 = vmatpush1.bf16.msra.mxu0 0
    %385 = vmatprep.subr.bf16.mxu0 0
    %386 = vmatpush1.bf16.msra.mxu0 0
    %387 = vmatprep.subr.bf16.mxu0 0
    %388 = vmatpush1.bf16.msra.mxu0 0
    %389 = vmatprep.subr.bf16.mxu0 0
    %390 = vmatpush1.bf16.msra.mxu0 0
    %391 = vmatprep.subr.bf16.mxu0 0
    %392 = vmatpush1.bf16.msra.mxu0 0
    %393 = vmatprep.subr.bf16.mxu0 0
    %394 = vmatpush1.bf16.msra.mxu0 0
    %395 = vmatprep.subr.bf16.mxu0 0
    %396 = vmatpush1.bf16.msra.mxu0 0
    %397 = vmatprep.mubr.bf16.mxu0 0
    %398 = vmatmul.mubr.bf16.gmra.mrb[0].mxu0 %v363
    %v399 = vpop.f32.mrb[0].mxu0
    %v400 = vadd.f32 0.0, %v399
    %v401 = vpop.f32.mrb[0].mxu0
    %v402 = vpop.f32.mrb[0].mxu0
    %v403 = vadd.f32 0.0, %v402
    %v404 = vpop.f32.mrb[0].mxu0
    %405 = vmatprep.mubr.bf16.mxu0 0
    %406 = vmatmul.mubr.bf16.gmra.mrb[0].mxu0 %v364
    %v407 = vpop.f32.mrb[0].mxu0
    %v408 = vadd.f32 0.0, %v407
    %v409 = vpop.f32.mrb[0].mxu0
    %v410 = vpop.f32.mrb[0].mxu0
    %v411 = vadd.f32 0.0, %v410
    %v412 = vpop.f32.mrb[0].mxu0
    %413 = vdwg.mxu0
    %v414 = vsub.f32 %v359, %v400
    %v415 = vsub.f32 %v360, %v403
    %v416 = vsub.f32 %v361, %v408
    %v417 = vsub.f32 %v362, %v411
    %v418 = vmul.f32 %v414, %v414
    %v419 = vmul.f32 %v415, %v415
    %v420 = vmul.f32 %v416, %v416
    %v421 = vmul.f32 %v417, %v417
    %v422 = vpack.c.bf16 %v419, %v418
    %v423 = vpack.c.bf16 %v421, %v420
    %424 = vmatprep.subr.bf16.mxu0 0
    %425 = vmatpush1.bf16.msra.mxu0 %v105
    %426 = vmatprep.subr.bf16.mxu0 0
    %427 = vmatpush1.bf16.msra.mxu0 %v106
    %428 = vmatprep.subr.bf16.mxu0 0
    %429 = vmatpush1.bf16.msra.mxu0 %v107
    %430 = vmatprep.subr.bf16.mxu0 0
    %431 = vmatpush1.bf16.msra.mxu0 %v108
    %432 = vmatprep.subr.bf16.mxu0 0
    %433 = vmatpush1.bf16.msra.mxu0 %v109
    %434 = vmatprep.subr.bf16.mxu0 0
    %435 = vmatpush1.bf16.msra.mxu0 %v110
    %436 = vmatprep.subr.bf16.mxu0 0
    %437 = vmatpush1.bf16.msra.mxu0 %v111
    %438 = vmatprep.subr.bf16.mxu0 0
    %439 = vmatpush1.bf16.msra.mxu0 %v112
    %440 = vmatprep.subr.bf16.mxu0 0
    %441 = vmatpush1.bf16.msra.mxu0 0
    %442 = vmatprep.subr.bf16.mxu0 0
    %443 = vmatpush1.bf16.msra.mxu0 0
    %444 = vmatprep.subr.bf16.mxu0 0
    %445 = vmatpush1.bf16.msra.mxu0 0
    %446 = vmatprep.subr.bf16.mxu0 0
    %447 = vmatpush1.bf16.msra.mxu0 0
    %448 = vmatprep.subr.bf16.mxu0 0
    %449 = vmatpush1.bf16.msra.mxu0 0
    %450 = vmatprep.subr.bf16.mxu0 0
    %451 = vmatpush1.bf16.msra.mxu0 0
    %452 = vmatprep.subr.bf16.mxu0 0
    %453 = vmatpush1.bf16.msra.mxu0 0
    %454 = vmatprep.subr.bf16.mxu0 0
    %455 = vmatpush1.bf16.msra.mxu0 0
    %456 = vmatprep.mubr.bf16.mxu0 0
    %457 = vmatmul.mubr.bf16.gmra.mrb[0].mxu0 %v422
    %v458 = vpop.f32.mrb[0].mxu0
    %v459 = vadd.f32 1e-05, %v458
    %v460 = vpop.f32.mrb[0].mxu0
    %v461 = vpop.f32.mrb[0].mxu0
    %v462 = vadd.f32 1e-05, %v461
    %v463 = vpop.f32.mrb[0].mxu0
    %464 = vmatprep.mubr.bf16.mxu0 0
    %465 = vmatmul.mubr.bf16.gmra.mrb[0].mxu0 %v423
    %v466 = vpop.f32.mrb[0].mxu0
    %v467 = vadd.f32 1e-05, %v466
    %v468 = vpop.f32.mrb[0].mxu0
    %v469 = vpop.f32.mrb[0].mxu0
    %v470 = vadd.f32 1e-05, %v469
    %v471 = vpop.f32.mrb[0].mxu0
    %472 = vdwg.mxu0
    %v473 = vrsqrt.pop %v459
    %v474 = vrsqrt.pop %v462
    %v475 = vrsqrt.pop %v467
    %v476 = vrsqrt.pop %v470
    %v477 = vmul.f32 %v414, %v473
    %v478 = vmul.f32 %v415, %v474
    %v479 = vmul.f32 %v416, %v475
    %v480 = vmul.f32 %v417, %v476
    %v481 = vpack.c.bf16 %v478, %v477
    %v482 = vpack.c.bf16 %v480, %v479
    %v483 = vld [vmem:[%s5] sm:$0xff]
    %v484 = vld [vmem:[%s5 + $0x8] sm:$0xff]
    %v485 = vld [vmem:[%s5 + $0x10] sm:$0xff]
    %v486 = vld [vmem:[%s5 + $0x18] sm:$0xff]
    %v487 = vld [vmem:[%s5 + $0x20] sm:$0xff]
    %v488 = vld [vmem:[%s5 + $0x28] sm:$0xff]
    %v489 = vld [vmem:[%s5 + $0x30] sm:$0xff]
    %v490 = vld [vmem:[%s5 + $0x38] sm:$0xff]
    %v491 = vld [vmem:[%s5 + $0x40] sm:$0xff]
    %v492 = vld [vmem:[%s5 + $0x48] sm:$0xff]
    %v493 = vld [vmem:[%s5 + $0x50] sm:$0xff]
    %v494 = vld [vmem:[%s5 + $0x58] sm:$0xff]
    %v495 = vld [vmem:[%s5 + $0x60] sm:$0xff]
    %v496 = vld [vmem:[%s5 + $0x68] sm:$0xff]
    %v497 = vld [vmem:[%s5 + $0x70] sm:$0xff]
    %v498 = vld [vmem:[%s5 + $0x78] sm:$0xff]
    %v499 = vld [vmem:[%s5 + $0x80] sm:$0xff]
    %v500 = vld [vmem:[%s5 + $0x88] sm:$0xff]
    %v501 = vld [vmem:[%s5 + $0x90] sm:$0xff]
    %v502 = vld [vmem:[%s5 + $0x98] sm:$0xff]
    %v503 = vld [vmem:[%s5 + $0xa0] sm:$0xff]
    %v504 = vld [vmem:[%s5 + $0xa8] sm:$0xff]
    %v505 = vld [vmem:[%s5 + $0xb0] sm:$0xff]
    %v506 = vld [vmem:[%s5 + $0xb8] sm:$0xff]
    %v507 = vld [vmem:[%s5 + $0xc0] sm:$0xff]
    %v508 = vld [vmem:[%s5 + $0xc8] sm:$0xff]
    %v509 = vld [vmem:[%s5 + $0xd0] sm:$0xff]
    %v510 = vld [vmem:[%s5 + $0xd8] sm:$0xff]
    %v511 = vld [vmem:[%s5 + $0xe0] sm:$0xff]
    %v512 = vld [vmem:[%s5 + $0xe8] sm:$0xff]
    %v513 = vld [vmem:[%s5 + $0xf0] sm:$0xff]
    %v514 = vld [vmem:[%s5 + $0xf8] sm:$0xff]
    %v515 = vld [vmem:[%s6] sm:$0xf]
    %v517 = vlaneseq
    %v518 = vshrl.u32 %v517, 7
    %v519 = vsub.s32 0, %v518
    %v520 = vrot.slane %v515, %v519
    %v521 = vlaneseq
    %v522 = vshrl.u32 %v521, 7
    %v523 = vsub.s32 1, %v522
    %v524 = vrot.slane %v515, %v523
    %v525 = vlaneseq
    %v526 = vshrl.u32 %v525, 7
    %v527 = vsub.s32 2, %v526
    %v528 = vrot.slane %v515, %v527
    %v529 = vlaneseq
    %v530 = vshrl.u32 %v529, 7
    %v531 = vsub.s32 3, %v530
    %v532 = vrot.slane %v515, %v531
    %v569 = vunpack.c.l.b16 %v483
    %v570 = vunpack.c.h.b16 %v483
    %v571 = vunpack.c.l.b16 %v484
    %v572 = vunpack.c.h.b16 %v484
    %v573 = vunpack.c.l.b16 %v485
    %v574 = vunpack.c.h.b16 %v485
    %v575 = vunpack.c.l.b16 %v486
    %v576 = vunpack.c.h.b16 %v486
    %v577 = vunpack.c.l.b16 %v487
    %v578 = vunpack.c.h.b16 %v487
    %v579 = vunpack.c.l.b16 %v488
    %v580 = vunpack.c.h.b16 %v488
    %v581 = vunpack.c.l.b16 %v489
    %v582 = vunpack.c.h.b16 %v489
    %v583 = vunpack.c.l.b16 %v490
    %v584 = vunpack.c.h.b16 %v490
    %v585 = vunpack.c.l.b16 %v491
    %v586 = vunpack.c.h.b16 %v491
    %v587 = vunpack.c.l.b16 %v492
    %v588 = vunpack.c.h.b16 %v492
    %v589 = vunpack.c.l.b16 %v493
    %v590 = vunpack.c.h.b16 %v493
    %v591 = vunpack.c.l.b16 %v494
    %v592 = vunpack.c.h.b16 %v494
    %v593 = vunpack.c.l.b16 %v495
    %v594 = vunpack.c.h.b16 %v495
    %v595 = vunpack.c.l.b16 %v496
    %v596 = vunpack.c.h.b16 %v496
    %v597 = vunpack.c.l.b16 %v497
    %v598 = vunpack.c.h.b16 %v497
    %v599 = vunpack.c.l.b16 %v498
    %v600 = vunpack.c.h.b16 %v498
    %v601 = vunpack.c.l.b16 %v499
    %v602 = vunpack.c.h.b16 %v499
    %v603 = vunpack.c.l.b16 %v500
    %v604 = vunpack.c.h.b16 %v500
    %v605 = vunpack.c.l.b16 %v501
    %v606 = vunpack.c.h.b16 %v501
    %v607 = vunpack.c.l.b16 %v502
    %v608 = vunpack.c.h.b16 %v502
    %v609 = vunpack.c.l.b16 %v503
    %v610 = vunpack.c.h.b16 %v503
    %v611 = vunpack.c.l.b16 %v504
    %v612 = vunpack.c.h.b16 %v504
    %v613 = vunpack.c.l.b16 %v505
    %v614 = vunpack.c.h.b16 %v505
    %v615 = vunpack.c.l.b16 %v506
    %v616 = vunpack.c.h.b16 %v506
    %v617 = vunpack.c.l.b16 %v507
    %v618 = vunpack.c.h.b16 %v507
    %v619 = vunpack.c.l.b16 %v508
    %v620 = vunpack.c.h.b16 %v508
    %v621 = vunpack.c.l.b16 %v509
    %v622 = vunpack.c.h.b16 %v509
    %v623 = vunpack.c.l.b16 %v510
    %v624 = vunpack.c.h.b16 %v510
    %v625 = vunpack.c.l.b16 %v511
    %v626 = vunpack.c.h.b16 %v511
    %v627 = vunpack.c.l.b16 %v512
    %v628 = vunpack.c.h.b16 %v512
    %v629 = vunpack.c.l.b16 %v513
    %v630 = vunpack.c.h.b16 %v513
    %v631 = vunpack.c.l.b16 %v514
    %v632 = vunpack.c.h.b16 %v514
    %v633 = vpack.c.b16 %v573, %v569
    %v634 = vpack.c.b16 %v574, %v570
    %v635 = vpack.c.b16 %v575, %v571
    %v636 = vpack.c.b16 %v576, %v572
    %v637 = vpack.c.b16 %v581, %v577
    %v638 = vpack.c.b16 %v582, %v578
    %v639 = vpack.c.b16 %v583, %v579
    %v640 = vpack.c.b16 %v584, %v580
    %v641 = vpack.c.b16 %v589, %v585
    %v642 = vpack.c.b16 %v590, %v586
    %v643 = vpack.c.b16 %v591, %v587
    %v644 = vpack.c.b16 %v592, %v588
    %v645 = vpack.c.b16 %v597, %v593
    %v646 = vpack.c.b16 %v598, %v594
    %v647 = vpack.c.b16 %v599, %v595
    %v648 = vpack.c.b16 %v600, %v596
    %v649 = vpack.c.b16 %v605, %v601
    %v650 = vpack.c.b16 %v606, %v602
    %v651 = vpack.c.b16 %v607, %v603
    %v652 = vpack.c.b16 %v608, %v604
    %v653 = vpack.c.b16 %v613, %v609
    %v654 = vpack.c.b16 %v614, %v610
    %v655 = vpack.c.b16 %v615, %v611
    %v656 = vpack.c.b16 %v616, %v612
    %v657 = vpack.c.b16 %v621, %v617
    %v658 = vpack.c.b16 %v622, %v618
    %v659 = vpack.c.b16 %v623, %v619
    %v660 = vpack.c.b16 %v624, %v620
    %v661 = vpack.c.b16 %v629, %v625
    %v662 = vpack.c.b16 %v630, %v626
    %v663 = vpack.c.b16 %v631, %v627
    %v664 = vpack.c.b16 %v632, %v628
    %697 = vmatprep.subr.bf16.mxu0 %v634
    %698 = vmatpush1.bf16.msra.mxu0 %v633
    %699 = vmatprep.subr.bf16.mxu0 %v638
    %700 = vmatpush1.bf16.msra.mxu0 %v637
    %701 = vmatprep.subr.bf16.mxu0 %v642
    %702 = vmatpush1.bf16.msra.mxu0 %v641
    %703 = vmatprep.subr.bf16.mxu0 %v646
    %704 = vmatpush1.bf16.msra.mxu0 %v645
    %705 = vmatprep.subr.bf16.mxu0 %v650
    %706 = vmatpush1.bf16.msra.mxu0 %v649
    %707 = vmatprep.subr.bf16.mxu0 %v654
    %708 = vmatpush1.bf16.msra.mxu0 %v653
    %709 = vmatprep.subr.bf16.mxu0 %v658
    %710 = vmatpush1.bf16.msra.mxu0 %v657
    %711 = vmatprep.subr.bf16.mxu0 %v662
    %712 = vmatpush1.bf16.msra.mxu0 %v661
    %713 = vmatprep.subr.bf16.mxu0 0
    %714 = vmatpush1.bf16.msra.mxu0 0
    %715 = vmatprep.subr.bf16.mxu0 0
    %716 = vmatpush1.bf16.msra.mxu0 0
    %717 = vmatprep.subr.bf16.mxu0 0
    %718 = vmatpush1.bf16.msra.mxu0 0
    %719 = vmatprep.subr.bf16.mxu0 0
    %720 = vmatpush1.bf16.msra.mxu0 0
    %721 = vmatprep.subr.bf16.mxu0 0
    %722 = vmatpush1.bf16.msra.mxu0 0
    %723 = vmatprep.subr.bf16.mxu0 0
    %724 = vmatpush1.bf16.msra.mxu0 0
    %725 = vmatprep.subr.bf16.mxu0 0
    %726 = vmatpush1.bf16.msra.mxu0 0
    %727 = vmatprep.subr.bf16.mxu0 0
    %728 = vmatpush1.bf16.msra.mxu0 0
    %729 = vmatprep.mubr.bf16.mxu0 0
    %730 = vmatmul.mubr.bf16.gmra.mrb[0].mxu0 %v481
    %v731 = vpop.f32.mrb[0].mxu0
    %v732 = vadd.f32 %v520, %v731
    %v733 = vpop.f32.mrb[0].mxu0
    %v734 = vadd.f32 %v524, %v733
    %v735 = vpop.f32.mrb[0].mxu0
    %v736 = vadd.f32 %v520, %v735
    %v737 = vpop.f32.mrb[0].mxu0
    %v738 = vadd.f32 %v524, %v737
    %739 = vmatprep.mubr.bf16.mxu0 0
    %740 = vmatmul.mubr.bf16.gmra.mrb[0].mxu0 %v482
    %v741 = vpop.f32.mrb[0].mxu0
    %v742 = vadd.f32 %v520, %v741
    %v743 = vpop.f32.mrb[0].mxu0
    %v744 = vadd.f32 %v524, %v743
    %v745 = vpop.f32.mrb[0].mxu0
    %v746 = vadd.f32 %v520, %v745
    %v747 = vpop.f32.mrb[0].mxu0
    %v748 = vadd.f32 %v524, %v747
    %749 = vdwg.mxu0
    %750 = vmatprep.subr.bf16.mxu0 %v636
    %751 = vmatpush1.bf16.msra.mxu0 %v635
    %752 = vmatprep.subr.bf16.mxu0 %v640
    %753 = vmatpush1.bf16.msra.mxu0 %v639
    %754 = vmatprep.subr.bf16.mxu0 %v644
    %755 = vmatpush1.bf16.msra.mxu0 %v643
    %756 = vmatprep.subr.bf16.mxu0 %v648
    %757 = vmatpush1.bf16.msra.mxu0 %v647
    %758 = vmatprep.subr.bf16.mxu0 %v652
    %759 = vmatpush1.bf16.msra.mxu0 %v651
    %760 = vmatprep.subr.bf16.mxu0 %v656
    %761 = vmatpush1.bf16.msra.mxu0 %v655
    %762 = vmatprep.subr.bf16.mxu0 %v660
    %763 = vmatpush1.bf16.msra.mxu0 %v659
    %764 = vmatprep.subr.bf16.mxu0 %v664
    %765 = vmatpush1.bf16.msra.mxu0 %v663
    %766 = vmatprep.subr.bf16.mxu0 0
    %767 = vmatpush1.bf16.msra.mxu0 0
    %768 = vmatprep.subr.bf16.mxu0 0
    %769 = vmatpush1.bf16.msra.mxu0 0
    %770 = vmatprep.subr.bf16.mxu0 0
    %771 = vmatpush1.bf16.msra.mxu0 0
    %772 = vmatprep.subr.bf16.mxu0 0
    %773 = vmatpush1.bf16.msra.mxu0 0
    %774 = vmatprep.subr.bf16.mxu0 0
    %775 = vmatpush1.bf16.msra.mxu0 0
    %776 = vmatprep.subr.bf16.mxu0 0
    %777 = vmatpush1.bf16.msra.mxu0 0
    %778 = vmatprep.subr.bf16.mxu0 0
    %779 = vmatpush1.bf16.msra.mxu0 0
    %780 = vmatprep.subr.bf16.mxu0 0
    %781 = vmatpush1.bf16.msra.mxu0 0
    %782 = vmatprep.mubr.bf16.mxu0 0
    %783 = vmatmul.mubr.bf16.gmra.mrb[0].mxu0 %v481
    %v784 = vpop.f32.mrb[0].mxu0
    %v785 = vadd.f32 %v528, %v784
    %v786 = vpop.f32.mrb[0].mxu0
    %v787 = vadd.f32 %v532, %v786
    %v788 = vpop.f32.mrb[0].mxu0
    %v789 = vadd.f32 %v528, %v788
    %v790 = vpop.f32.mrb[0].mxu0
    %v791 = vadd.f32 %v532, %v790
    %792 = vmatprep.mubr.bf16.mxu0 0
    %793 = vmatmul.mubr.bf16.gmra.mrb[0].mxu0 %v482
    %v794 = vpop.f32.mrb[0].mxu0
    %v795 = vadd.f32 %v528, %v794
    %v796 = vpop.f32.mrb[0].mxu0
    %v797 = vadd.f32 %v532, %v796
    %v798 = vpop.f32.mrb[0].mxu0
    %v799 = vadd.f32 %v528, %v798
    %v800 = vpop.f32.mrb[0].mxu0
    %v801 = vadd.f32 %v532, %v800
    %802 = vdwg.mxu0
    %v803 = vmul.f32 %v732, %v732
    %v804 = vmul.f32 %v734, %v734
    %v805 = vmul.f32 %v785, %v785
    %v806 = vmul.f32 %v787, %v787
    %v807 = vmul.f32 %v736, %v736
    %v808 = vmul.f32 %v738, %v738
    %v809 = vmul.f32 %v789, %v789
    %v810 = vmul.f32 %v791, %v791
    %v811 = vmul.f32 %v742, %v742
    %v812 = vmul.f32 %v744, %v744
    %v813 = vmul.f32 %v795, %v795
    %v814 = vmul.f32 %v797, %v797
    %v815 = vmul.f32 %v746, %v746
    %v816 = vmul.f32 %v748, %v748
    %v817 = vmul.f32 %v799, %v799
    %v818 = vmul.f32 %v801, %v801
    %v819 = vmul.f32 %v732, %v803
    %v820 = vmul.f32 %v734, %v804
    %v821 = vmul.f32 %v785, %v805
    %v822 = vmul.f32 %v787, %v806
    %v823 = vmul.f32 %v736, %v807
    %v824 = vmul.f32 %v738, %v808
    %v825 = vmul.f32 %v789, %v809
    %v826 = vmul.f32 %v791, %v810
    %v827 = vmul.f32 %v742, %v811
    %v828 = vmul.f32 %v744, %v812
    %v829 = vmul.f32 %v795, %v813
    %v830 = vmul.f32 %v797, %v814
    %v831 = vmul.f32 %v746, %v815
    %v832 = vmul.f32 %v748, %v816
    %v833 = vmul.f32 %v799, %v817
    %v834 = vmul.f32 %v801, %v818
    %v835 = vmul.f32 %v819, 0.044715
    %v836 = vmul.f32 %v820, 0.044715
    %v837 = vmul.f32 %v821, 0.044715
    %v838 = vmul.f32 %v822, 0.044715
    %v839 = vmul.f32 %v823, 0.044715
    %v840 = vmul.f32 %v824, 0.044715
    %v841 = vmul.f32 %v825, 0.044715
    %v842 = vmul.f32 %v826, 0.044715
    %v843 = vmul.f32 %v827, 0.044715
    %v844 = vmul.f32 %v828, 0.044715
    %v845 = vmul.f32 %v829, 0.044715
    %v846 = vmul.f32 %v830, 0.044715
    %v847 = vmul.f32 %v831, 0.044715
    %v848 = vmul.f32 %v832, 0.044715
    %v849 = vmul.f32 %v833, 0.044715
    %v850 = vmul.f32 %v834, 0.044715
    %v851 = vadd.f32 %v732, %v835
    %v852 = vadd.f32 %v734, %v836
    %v853 = vadd.f32 %v785, %v837
    %v854 = vadd.f32 %v787, %v838
    %v855 = vadd.f32 %v736, %v839
    %v856 = vadd.f32 %v738, %v840
    %v857 = vadd.f32 %v789, %v841
    %v858 = vadd.f32 %v791, %v842
    %v859 = vadd.f32 %v742, %v843
    %v860 = vadd.f32 %v744, %v844
    %v861 = vadd.f32 %v795, %v845
    %v862 = vadd.f32 %v797, %v846
    %v863 = vadd.f32 %v746, %v847
    %v864 = vadd.f32 %v748, %v848
    %v865 = vadd.f32 %v799, %v849
    %v866 = vadd.f32 %v801, %v850
    %v867 = vmul.f32 %v851, 0.7978846
    %v868 = vmul.f32 %v852, 0.7978846
    %v869 = vmul.f32 %v853, 0.7978846
    %v870 = vmul.f32 %v854, 0.7978846
    %v871 = vmul.f32 %v855, 0.7978846
    %v872 = vmul.f32 %v856, 0.7978846
    %v873 = vmul.f32 %v857, 0.7978846
    %v874 = vmul.f32 %v858, 0.7978846
    %v875 = vmul.f32 %v859, 0.7978846
    %v876 = vmul.f32 %v860, 0.7978846
    %v877 = vmul.f32 %v861, 0.7978846
    %v878 = vmul.f32 %v862, 0.7978846
    %v879 = vmul.f32 %v863, 0.7978846
    %v880 = vmul.f32 %v864, 0.7978846
    %v881 = vmul.f32 %v865, 0.7978846
    %v882 = vmul.f32 %v866, 0.7978846
    %v883 = vtanh.pop %v867
    %v884 = vtanh.pop %v868
    %v885 = vtanh.pop %v869
    %v886 = vtanh.pop %v870
    %v887 = vtanh.pop %v871
    %v888 = vtanh.pop %v872
    %v889 = vtanh.pop %v873
    %v890 = vtanh.pop %v874
    %v891 = vtanh.pop %v875
    %v892 = vtanh.pop %v876
    %v893 = vtanh.pop %v877
    %v894 = vtanh.pop %v878
    %v895 = vtanh.pop %v879
    %v896 = vtanh.pop %v880
    %v897 = vtanh.pop %v881
    %v898 = vtanh.pop %v882
    %v899 = vadd.f32 %v883, 1.0
    %v900 = vadd.f32 %v884, 1.0
    %v901 = vadd.f32 %v885, 1.0
    %v902 = vadd.f32 %v886, 1.0
    %v903 = vadd.f32 %v887, 1.0
    %v904 = vadd.f32 %v888, 1.0
    %v905 = vadd.f32 %v889, 1.0
    %v906 = vadd.f32 %v890, 1.0
    %v907 = vadd.f32 %v891, 1.0
    %v908 = vadd.f32 %v892, 1.0
    %v909 = vadd.f32 %v893, 1.0
    %v910 = vadd.f32 %v894, 1.0
    %v911 = vadd.f32 %v895, 1.0
    %v912 = vadd.f32 %v896, 1.0
    %v913 = vadd.f32 %v897, 1.0
    %v914 = vadd.f32 %v898, 1.0
    %v915 = vmul.f32 %v899, 0.5
    %v916 = vmul.f32 %v900, 0.5
    %v917 = vmul.f32 %v901, 0.5
    %v918 = vmul.f32 %v902, 0.5
    %v919 = vmul.f32 %v903, 0.5
    %v920 = vmul.f32 %v904, 0.5
    %v921 = vmul.f32 %v905, 0.5
    %v922 = vmul.f32 %v906, 0.5
    %v923 = vmul.f32 %v907, 0.5
    %v924 = vmul.f32 %v908, 0.5
    %v925 = vmul.f32 %v909, 0.5
    %v926 = vmul.f32 %v910, 0.5
    %v927 = vmul.f32 %v911, 0.5
    %v928 = vmul.f32 %v912, 0.5
    %v929 = vmul.f32 %v913, 0.5
    %v930 = vmul.f32 %v914, 0.5
    %v931 = vmul.f32 %v732, %v915
    %v932 = vmul.f32 %v734, %v916
    %v933 = vmul.f32 %v785, %v917
    %v934 = vmul.f32 %v787, %v918
    %v935 = vmul.f32 %v736, %v919
    %v936 = vmul.f32 %v738, %v920
    %v937 = vmul.f32 %v789, %v921
    %v938 = vmul.f32 %v791, %v922
    %v939 = vmul.f32 %v742, %v923
    %v940 = vmul.f32 %v744, %v924
    %v941 = vmul.f32 %v795, %v925
    %v942 = vmul.f32 %v797, %v926
    %v943 = vmul.f32 %v746, %v927
    %v944 = vmul.f32 %v748, %v928
    %v945 = vmul.f32 %v799, %v929
    %v946 = vmul.f32 %v801, %v930
    %v947 = vpack.c.bf16 %v935, %v931
    %v948 = vpack.c.bf16 %v936, %v932
    %v949 = vpack.c.bf16 %v937, %v933
    %v950 = vpack.c.bf16 %v938, %v934
    %v951 = vpack.c.bf16 %v943, %v939
    %v952 = vpack.c.bf16 %v944, %v940
    %v953 = vpack.c.bf16 %v945, %v941
    %v954 = vpack.c.bf16 %v946, %v942
    %v955 = vld [vmem:[#allocation2] sm:$0xf]
    %v956 = vld [vmem:[#allocation2 + $0x4] sm:$0xf]
    %v957 = vld [vmem:[#allocation2 + $0x8] sm:$0xf]
    %v958 = vld [vmem:[#allocation2 + $0xc] sm:$0xf]
    %v959 = vld [vmem:[#allocation2 + $0x10] sm:$0xf]
    %v960 = vld [vmem:[#allocation2 + $0x14] sm:$0xf]
    %v961 = vld [vmem:[#allocation2 + $0x18] sm:$0xf]
    %v962 = vld [vmem:[#allocation2 + $0x1c] sm:$0xf]
    %v963 = vld [vmem:[#allocation2 + $0x20] sm:$0xf]
    %v964 = vld [vmem:[#allocation2 + $0x24] sm:$0xf]
    %v965 = vld [vmem:[#allocation2 + $0x28] sm:$0xf]
    %v966 = vld [vmem:[#allocation2 + $0x2c] sm:$0xf]
    %v967 = vld [vmem:[#allocation2 + $0x30] sm:$0xf]
    %v968 = vld [vmem:[#allocation2 + $0x34] sm:$0xf]
    %v969 = vld [vmem:[#allocation2 + $0x38] sm:$0xf]
    %v970 = vld [vmem:[#allocation2 + $0x3c] sm:$0xf]
    %v971 = vld [vmem:[#allocation2 + $0x40] sm:$0xf]
    %v972 = vld [vmem:[#allocation2 + $0x44] sm:$0xf]
    %v973 = vld [vmem:[#allocation2 + $0x48] sm:$0xf]
    %v974 = vld [vmem:[#allocation2 + $0x4c] sm:$0xf]
    %v975 = vld [vmem:[#allocation2 + $0x50] sm:$0xf]
    %v976 = vld [vmem:[#allocation2 + $0x54] sm:$0xf]
    %v977 = vld [vmem:[#allocation2 + $0x58] sm:$0xf]
    %v978 = vld [vmem:[#allocation2 + $0x5c] sm:$0xf]
    %v979 = vld [vmem:[#allocation2 + $0x60] sm:$0xf]
    %v980 = vld [vmem:[#allocation2 + $0x64] sm:$0xf]
    %v981 = vld [vmem:[#allocation2 + $0x68] sm:$0xf]
    %v982 = vld [vmem:[#allocation2 + $0x6c] sm:$0xf]
    %v983 = vld [vmem:[#allocation2 + $0x70] sm:$0xf]
    %v984 = vld [vmem:[#allocation2 + $0x74] sm:$0xf]
    %v985 = vld [vmem:[#allocation2 + $0x78] sm:$0xf]
    %v986 = vld [vmem:[#allocation2 + $0x7c] sm:$0xf]
    %v987 = vld [vmem:[#allocation2 + $0x80] sm:$0xf]
    %v988 = vld [vmem:[#allocation2 + $0x84] sm:$0xf]
    %v989 = vld [vmem:[#allocation2 + $0x88] sm:$0xf]
    %v990 = vld [vmem:[#allocation2 + $0x8c] sm:$0xf]
    %v991 = vld [vmem:[#allocation2 + $0x90] sm:$0xf]
    %v992 = vld [vmem:[#allocation2 + $0x94] sm:$0xf]
    %v993 = vld [vmem:[#allocation2 + $0x98] sm:$0xf]
    %v994 = vld [vmem:[#allocation2 + $0x9c] sm:$0xf]
    %v995 = vld [vmem:[#allocation2 + $0xa0] sm:$0xf]
    %v996 = vld [vmem:[#allocation2 + $0xa4] sm:$0xf]
    %v997 = vld [vmem:[#allocation2 + $0xa8] sm:$0xf]
    %v998 = vld [vmem:[#allocation2 + $0xac] sm:$0xf]
    %v999 = vld [vmem:[#allocation2 + $0xb0] sm:$0xf]
    %v1000 = vld [vmem:[#allocation2 + $0xb4] sm:$0xf]
    %v1001 = vld [vmem:[#allocation2 + $0xb8] sm:$0xf]
    %v1002 = vld [vmem:[#allocation2 + $0xbc] sm:$0xf]
    %v1003 = vld [vmem:[#allocation2 + $0xc0] sm:$0xf]
    %v1004 = vld [vmem:[#allocation2 + $0xc4] sm:$0xf]
    %v1005 = vld [vmem:[#allocation2 + $0xc8] sm:$0xf]
    %v1006 = vld [vmem:[#allocation2 + $0xcc] sm:$0xf]
    %v1007 = vld [vmem:[#allocation2 + $0xd0] sm:$0xf]
    %v1008 = vld [vmem:[#allocation2 + $0xd4] sm:$0xf]
    %v1009 = vld [vmem:[#allocation2 + $0xd8] sm:$0xf]
    %v1010 = vld [vmem:[#allocation2 + $0xdc] sm:$0xf]
    %v1011 = vld [vmem:[#allocation2 + $0xe0] sm:$0xf]
    %v1012 = vld [vmem:[#allocation2 + $0xe4] sm:$0xf]
    %v1013 = vld [vmem:[#allocation2 + $0xe8] sm:$0xf]
    %v1014 = vld [vmem:[#allocation2 + $0xec] sm:$0xf]
    %v1015 = vld [vmem:[#allocation2 + $0xf0] sm:$0xf]
    %v1016 = vld [vmem:[#allocation2 + $0xf4] sm:$0xf]
    %v1017 = vld [vmem:[#allocation2 + $0xf8] sm:$0xf]
    %v1018 = vld [vmem:[#allocation2 + $0xfc] sm:$0xf]
    %v1019 = vld [vmem:[%s8] sm:$0x1]
    %v1021 = vlaneseq
    %v1022 = vshrl.u32 %v1021, 7
    %v1023 = vsub.s32 0, %v1022
    %v1024 = vrot.slane %v1019, %v1023
    %v1090 = vunpack.c.l.b16 %v955
    %v1091 = vunpack.c.l.b16 %v956
    %v1092 = vunpack.c.l.b16 %v957
    %v1093 = vunpack.c.l.b16 %v958
    %v1094 = vunpack.c.l.b16 %v959
    %v1095 = vunpack.c.l.b16 %v960
    %v1096 = vunpack.c.l.b16 %v961
    %v1097 = vunpack.c.l.b16 %v962
    %v1098 = vunpack.c.l.b16 %v963
    %v1099 = vunpack.c.l.b16 %v964
    %v1100 = vunpack.c.l.b16 %v965
    %v1101 = vunpack.c.l.b16 %v966
    %v1102 = vunpack.c.l.b16 %v967
    %v1103 = vunpack.c.l.b16 %v968
    %v1104 = vunpack.c.l.b16 %v969
    %v1105 = vunpack.c.l.b16 %v970
    %v1106 = vunpack.c.l.b16 %v971
    %v1107 = vunpack.c.l.b16 %v972
    %v1108 = vunpack.c.l.b16 %v973
    %v1109 = vunpack.c.l.b16 %v974
    %v1110 = vunpack.c.l.b16 %v975
    %v1111 = vunpack.c.l.b16 %v976
    %v1112 = vunpack.c.l.b16 %v977
    %v1113 = vunpack.c.l.b16 %v978
    %v1114 = vunpack.c.l.b16 %v979
    %v1115 = vunpack.c.l.b16 %v980
    %v1116 = vunpack.c.l.b16 %v981
    %v1117 = vunpack.c.l.b16 %v982
    %v1118 = vunpack.c.l.b16 %v983
    %v1119 = vunpack.c.l.b16 %v984
    %v1120 = vunpack.c.l.b16 %v985
    %v1121 = vunpack.c.l.b16 %v986
    %v1122 = vunpack.c.l.b16 %v987
    %v1123 = vunpack.c.l.b16 %v988
    %v1124 = vunpack.c.l.b16 %v989
    %v1125 = vunpack.c.l.b16 %v990
    %v1126 = vunpack.c.l.b16 %v991
    %v1127 = vunpack.c.l.b16 %v992
    %v1128 = vunpack.c.l.b16 %v993
    %v1129 = vunpack.c.l.b16 %v994
    %v1130 = vunpack.c.l.b16 %v995
    %v1131 = vunpack.c.l.b16 %v996
    %v1132 = vunpack.c.l.b16 %v997
    %v1133 = vunpack.c.l.b16 %v998
    %v1134 = vunpack.c.l.b16 %v999
    %v1135 = vunpack.c.l.b16 %v1000
    %v1136 = vunpack.c.l.b16 %v1001
    %v1137 = vunpack.c.l.b16 %v1002
    %v1138 = vunpack.c.l.b16 %v1003
    %v1139 = vunpack.c.l.b16 %v1004
    %v1140 = vunpack.c.l.b16 %v1005
    %v1141 = vunpack.c.l.b16 %v1006
    %v1142 = vunpack.c.l.b16 %v1007
    %v1143 = vunpack.c.l.b16 %v1008
    %v1144 = vunpack.c.l.b16 %v1009
    %v1145 = vunpack.c.l.b16 %v1010
    %v1146 = vunpack.c.l.b16 %v1011
    %v1147 = vunpack.c.l.b16 %v1012
    %v1148 = vunpack.c.l.b16 %v1013
    %v1149 = vunpack.c.l.b16 %v1014
    %v1150 = vunpack.c.l.b16 %v1015
    %v1151 = vunpack.c.l.b16 %v1016
    %v1152 = vunpack.c.l.b16 %v1017
    %v1153 = vunpack.c.l.b16 %v1018
    %v1154 = vpack.c.b16 %v1091, %v1090
    %v1155 = vpack.c.b16 %v1093, %v1092
    %v1156 = vpack.c.b16 %v1095, %v1094
    %v1157 = vpack.c.b16 %v1097, %v1096
    %v1158 = vpack.c.b16 %v1099, %v1098
    %v1159 = vpack.c.b16 %v1101, %v1100
    %v1160 = vpack.c.b16 %v1103, %v1102
    %v1161 = vpack.c.b16 %v1105, %v1104
    %v1162 = vpack.c.b16 %v1107, %v1106
    %v1163 = vpack.c.b16 %v1109, %v1108
    %v1164 = vpack.c.b16 %v1111, %v1110
    %v1165 = vpack.c.b16 %v1113, %v1112
    %v1166 = vpack.c.b16 %v1115, %v1114
    %v1167 = vpack.c.b16 %v1117, %v1116
    %v1168 = vpack.c.b16 %v1119, %v1118
    %v1169 = vpack.c.b16 %v1121, %v1120
    %v1170 = vpack.c.b16 %v1123, %v1122
    %v1171 = vpack.c.b16 %v1125, %v1124
    %v1172 = vpack.c.b16 %v1127, %v1126
    %v1173 = vpack.c.b16 %v1129, %v1128
    %v1174 = vpack.c.b16 %v1131, %v1130
    %v1175 = vpack.c.b16 %v1133, %v1132
    %v1176 = vpack.c.b16 %v1135, %v1134
    %v1177 = vpack.c.b16 %v1137, %v1136
    %v1178 = vpack.c.b16 %v1139, %v1138
    %v1179 = vpack.c.b16 %v1141, %v1140
    %v1180 = vpack.c.b16 %v1143, %v1142
    %v1181 = vpack.c.b16 %v1145, %v1144
    %v1182 = vpack.c.b16 %v1147, %v1146
    %v1183 = vpack.c.b16 %v1149, %v1148
    %v1184 = vpack.c.b16 %v1151, %v1150
    %v1185 = vpack.c.b16 %v1153, %v1152
    %1218 = vmatprep.subr.bf16.mxu0 0
    %1219 = vmatpush1.bf16.msra.mxu0 %v1154
    %1220 = vmatprep.subr.bf16.mxu0 0
    %1221 = vmatpush1.bf16.msra.mxu0 %v1155
    %1222 = vmatprep.subr.bf16.mxu0 0
    %1223 = vmatpush1.bf16.msra.mxu0 %v1156
    %1224 = vmatprep.subr.bf16.mxu0 0
    %1225 = vmatpush1.bf16.msra.mxu0 %v1157
    %1226 = vmatprep.subr.bf16.mxu0 0
    %1227 = vmatpush1.bf16.msra.mxu0 %v1158
    %1228 = vmatprep.subr.bf16.mxu0 0
    %1229 = vmatpush1.bf16.msra.mxu0 %v1159
    %1230 = vmatprep.subr.bf16.mxu0 0
    %1231 = vmatpush1.bf16.msra.mxu0 %v1160
    %1232 = vmatprep.subr.bf16.mxu0 0
    %1233 = vmatpush1.bf16.msra.mxu0 %v1161
    %1234 = vmatprep.subr.bf16.mxu0 0
    %1235 = vmatpush1.bf16.msra.mxu0 %v1162
    %1236 = vmatprep.subr.bf16.mxu0 0
    %1237 = vmatpush1.bf16.msra.mxu0 %v1163
    %1238 = vmatprep.subr.bf16.mxu0 0
    %1239 = vmatpush1.bf16.msra.mxu0 %v1164
    %1240 = vmatprep.subr.bf16.mxu0 0
    %1241 = vmatpush1.bf16.msra.mxu0 %v1165
    %1242 = vmatprep.subr.bf16.mxu0 0
    %1243 = vmatpush1.bf16.msra.mxu0 %v1166
    %1244 = vmatprep.subr.bf16.mxu0 0
    %1245 = vmatpush1.bf16.msra.mxu0 %v1167
    %1246 = vmatprep.subr.bf16.mxu0 0
    %1247 = vmatpush1.bf16.msra.mxu0 %v1168
    %1248 = vmatprep.subr.bf16.mxu0 0
    %1249 = vmatpush1.bf16.msra.mxu0 %v1169
    %1250 = vmatprep.mubr.bf16.mxu0 %v948
    %1251 = vmatmul.mubr.bf16.gmra.mrb[0].mxu0 %v947
    %v1252 = vpop.f32.mrb[0].mxu0
    %v1253 = vadd.f32 %v1024, %v1252
    %v1254 = vpop.f32.mrb[0].mxu0
    %v1255 = vpop.f32.mrb[0].mxu0
    %v1256 = vadd.f32 %v1024, %v1255
    %v1257 = vpop.f32.mrb[0].mxu0
    %1258 = vmatprep.mubr.bf16.mxu0 %v952
    %1259 = vmatmul.mubr.bf16.gmra.mrb[0].mxu0 %v951
    %v1260 = vpop.f32.mrb[0].mxu0
    %v1261 = vadd.f32 %v1024, %v1260
    %v1262 = vpop.f32.mrb[0].mxu0
    %v1263 = vpop.f32.mrb[0].mxu0
    %v1264 = vadd.f32 %v1024, %v1263
    %v1265 = vpop.f32.mrb[0].mxu0
    %1266 = vdwg.mxu0
    %1267 = vmatprep.subr.bf16.mxu0 0
    %1268 = vmatpush1.bf16.msra.mxu0 %v1170
    %1269 = vmatprep.subr.bf16.mxu0 0
    %1270 = vmatpush1.bf16.msra.mxu0 %v1171
    %1271 = vmatprep.subr.bf16.mxu0 0
    %1272 = vmatpush1.bf16.msra.mxu0 %v1172
    %1273 = vmatprep.subr.bf16.mxu0 0
    %1274 = vmatpush1.bf16.msra.mxu0 %v1173
    %1275 = vmatprep.subr.bf16.mxu0 0
    %1276 = vmatpush1.bf16.msra.mxu0 %v1174
    %1277 = vmatprep.subr.bf16.mxu0 0
    %1278 = vmatpush1.bf16.msra.mxu0 %v1175
    %1279 = vmatprep.subr.bf16.mxu0 0
    %1280 = vmatpush1.bf16.msra.mxu0 %v1176
    %1281 = vmatprep.subr.bf16.mxu0 0
    %1282 = vmatpush1.bf16.msra.mxu0 %v1177
    %1283 = vmatprep.subr.bf16.mxu0 0
    %1284 = vmatpush1.bf16.msra.mxu0 %v1178
    %1285 = vmatprep.subr.bf16.mxu0 0
    %1286 = vmatpush1.bf16.msra.mxu0 %v1179
    %1287 = vmatprep.subr.bf16.mxu0 0
    %1288 = vmatpush1.bf16.msra.mxu0 %v1180
    %1289 = vmatprep.subr.bf16.mxu0 0
    %1290 = vmatpush1.bf16.msra.mxu0 %v1181
    %1291 = vmatprep.subr.bf16.mxu0 0
    %1292 = vmatpush1.bf16.msra.mxu0 %v1182
    %1293 = vmatprep.subr.bf16.mxu0 0
    %1294 = vmatpush1.bf16.msra.mxu0 %v1183
    %1295 = vmatprep.subr.bf16.mxu0 0
    %1296 = vmatpush1.bf16.msra.mxu0 %v1184
    %1297 = vmatprep.subr.bf16.mxu0 0
    %1298 = vmatpush1.bf16.msra.mxu0 %v1185
    %1299 = vmatprep.mubr.bf16.mxu0 %v950
    %1300 = vmatmul.mubr.bf16.gmra.mrb[0].mxu0 %v949
    %v1301 = vpop.f32.mrb[0].mxu0
    %v1302 = vadd.f32 %v1253, %v1301
    %v1303 = vpop.f32.mrb[0].mxu0
    %v1304 = vpop.f32.mrb[0].mxu0
    %v1305 = vadd.f32 %v1256, %v1304
    %v1306 = vpop.f32.mrb[0].mxu0
    %1307 = vmatprep.mubr.bf16.mxu0 %v954
    %1308 = vmatmul.mubr.bf16.gmra.mrb[0].mxu0 %v953
    %v1309 = vpop.f32.mrb[0].mxu0
    %v1310 = vadd.f32 %v1261, %v1309
    %v1311 = vpop.f32.mrb[0].mxu0
    %v1312 = vpop.f32.mrb[0].mxu0
    %v1313 = vadd.f32 %v1264, %v1312
    %v1314 = vpop.f32.mrb[0].mxu0
    %1315 = vdwg.mxu0
    %v1316 = vadd.f32 %v359, %v1302
    %v1317 = vadd.f32 %v360, %v1305
    %v1318 = vadd.f32 %v361, %v1310
    %v1319 = vadd.f32 %v362, %v1313
    %s1320 = scalar_lea.vmem %s3, 64
    %v1321 = vld [vmem:[%s1320] sm:$0xf]
    %v1322 = vld [vmem:[%s1320 + $0x4] sm:$0xf]
    %v1323 = vld [vmem:[%s1320 + $0x8] sm:$0xf]
    %v1324 = vld [vmem:[%s1320 + $0xc] sm:$0xf]
    %v1325 = vld [vmem:[%s1320 + $0x10] sm:$0xf]
    %v1326 = vld [vmem:[%s1320 + $0x14] sm:$0xf]
    %v1327 = vld [vmem:[%s1320 + $0x18] sm:$0xf]
    %v1328 = vld [vmem:[%s1320 + $0x1c] sm:$0xf]
    %v1329 = vld [vmem:[%s1320 + $0x20] sm:$0xf]
    %v1330 = vld [vmem:[%s1320 + $0x24] sm:$0xf]
    %v1331 = vld [vmem:[%s1320 + $0x28] sm:$0xf]
    %v1332 = vld [vmem:[%s1320 + $0x2c] sm:$0xf]
    %v1333 = vld [vmem:[%s1320 + $0x30] sm:$0xf]
    %v1334 = vld [vmem:[%s1320 + $0x34] sm:$0xf]
    %v1335 = vld [vmem:[%s1320 + $0x38] sm:$0xf]
    %v1336 = vld [vmem:[%s1320 + $0x3c] sm:$0xf]
    %s1337 = scalar_lea.vmem %s4, 1
    %v1338 = vld [vmem:[%s1337] sm:$0x1]
    %v1340 = vlaneseq
    %v1341 = vshrl.u32 %v1340, 7
    %v1342 = vsub.s32 0, %v1341
    %v1343 = vrot.slane %v1338, %v1342
    %v1361 = vunpack.c.l.b16 %v1321
    %v1362 = vunpack.c.l.b16 %v1322
    %v1363 = vunpack.c.l.b16 %v1323
    %v1364 = vunpack.c.l.b16 %v1324
    %v1365 = vunpack.c.l.b16 %v1325
    %v1366 = vunpack.c.l.b16 %v1326
    %v1367 = vunpack.c.l.b16 %v1327
    %v1368 = vunpack.c.l.b16 %v1328
    %v1369 = vunpack.c.l.b16 %v1329
    %v1370 = vunpack.c.l.b16 %v1330
    %v1371 = vunpack.c.l.b16 %v1331
    %v1372 = vunpack.c.l.b16 %v1332
    %v1373 = vunpack.c.l.b16 %v1333
    %v1374 = vunpack.c.l.b16 %v1334
    %v1375 = vunpack.c.l.b16 %v1335
    %v1376 = vunpack.c.l.b16 %v1336
    %v1377 = vpack.c.b16 %v1362, %v1361
    %v1378 = vpack.c.b16 %v1364, %v1363
    %v1379 = vpack.c.b16 %v1366, %v1365
    %v1380 = vpack.c.b16 %v1368, %v1367
    %v1381 = vpack.c.b16 %v1370, %v1369
    %v1382 = vpack.c.b16 %v1372, %v1371
    %v1383 = vpack.c.b16 %v1374, %v1373
    %v1384 = vpack.c.b16 %v1376, %v1375
    %1393 = vmatprep.subr.bf16.mxu0 0
    %1394 = vmatpush1.bf16.msra.mxu0 %v1377
    %1395 = vmatprep.subr.bf16.mxu0 0
    %1396 = vmatpush1.bf16.msra.mxu0 %v1378
    %1397 = vmatprep.subr.bf16.mxu0 0
    %1398 = vmatpush1.bf16.msra.mxu0 %v1379
    %1399 = vmatprep.subr.bf16.mxu0 0
    %1400 = vmatpush1.bf16.msra.mxu0 %v1380
    %1401 = vmatprep.subr.bf16.mxu0 0
    %1402 = vmatpush1.bf16.msra.mxu0 %v1381
    %1403 = vmatprep.subr.bf16.mxu0 0
    %1404 = vmatpush1.bf16.msra.mxu0 %v1382
    %1405 = vmatprep.subr.bf16.mxu0 0
    %1406 = vmatpush1.bf16.msra.mxu0 %v1383
    %1407 = vmatprep.subr.bf16.mxu0 0
    %1408 = vmatpush1.bf16.msra.mxu0 %v1384
    %1409 = vmatprep.subr.bf16.mxu0 0
    %1410 = vmatpush1.bf16.msra.mxu0 0
    %1411 = vmatprep.subr.bf16.mxu0 0
    %1412 = vmatpush1.bf16.msra.mxu0 0
    %1413 = vmatprep.subr.bf16.mxu0 0
    %1414 = vmatpush1.bf16.msra.mxu0 0
    %1415 = vmatprep.subr.bf16.mxu0 0
    %1416 = vmatpush1.bf16.msra.mxu0 0
    %1417 = vmatprep.subr.bf16.mxu0 0
    %1418 = vmatpush1.bf16.msra.mxu0 0
    %1419 = vmatprep.subr.bf16.mxu0 0
    %1420 = vmatpush1.bf16.msra.mxu0 0
    %1421 = vmatprep.subr.bf16.mxu0 0
    %1422 = vmatpush1.bf16.msra.mxu0 0
    %1423 = vmatprep.subr.bf16.mxu0 0
    %1424 = vmatpush1.bf16.msra.mxu0 0
    %1425 = vmatprep.mubr.bf16.mxu0 0
    %1426 = vmatmul.mubr.bf16.gmra.mrb[0].mxu0 %v237
    %v1427 = vpop.f32.mrb[0].mxu0
    %v1428 = vadd.f32 %v1343, %v1427
    %v1429 = vpop.f32.mrb[0].mxu0
    %v1430 = vpop.f32.mrb[0].mxu0
    %v1431 = vadd.f32 %v1343, %v1430
    %v1432 = vpop.f32.mrb[0].mxu0
    %1433 = vmatprep.mubr.bf16.mxu0 0
    %1434 = vmatmul.mubr.bf16.gmra.mrb[0].mxu0 %v238
    %v1435 = vpop.f32.mrb[0].mxu0
    %v1436 = vadd.f32 %v1343, %v1435
    %v1437 = vpop.f32.mrb[0].mxu0
    %v1438 = vpop.f32.mrb[0].mxu0
    %v1439 = vadd.f32 %v1343, %v1438
    %v1440 = vpop.f32.mrb[0].mxu0
    %1441 = vdwg.mxu0
    %v1442 = vadd.f32 %v1316, %v1428
    %v1443 = vadd.f32 %v1317, %v1431
    %v1444 = vadd.f32 %v1318, %v1436
    %v1445 = vadd.f32 %v1319, %v1439
    %v1446 = vpack.c.bf16 %v1443, %v1442
    %v1447 = vpack.c.bf16 %v1445, %v1444
    %1448 = vmatprep.subr.bf16.mxu0 0
    %1449 = vmatpush1.bf16.msra.mxu0 %v105
    %1450 = vmatprep.subr.bf16.mxu0 0
    %1451 = vmatpush1.bf16.msra.mxu0 %v106
    %1452 = vmatprep.subr.bf16.mxu0 0
    %1453 = vmatpush1.bf16.msra.mxu0 %v107
    %1454 = vmatprep.subr.bf16.mxu0 0
    %1455 = vmatpush1.bf16.msra.mxu0 %v108
    %1456 = vmatprep.subr.bf16.mxu0 0
    %1457 = vmatpush1.bf16.msra.mxu0 %v109
    %1458 = vmatprep.subr.bf16.mxu0 0
    %1459 = vmatpush1.bf16.msra.mxu0 %v110
    %1460 = vmatprep.subr.bf16.mxu0 0
    %1461 = vmatpush1.bf16.msra.mxu0 %v111
    %1462 = vmatprep.subr.bf16.mxu0 0
    %1463 = vmatpush1.bf16.msra.mxu0 %v112
    %1464 = vmatprep.subr.bf16.mxu0 0
    %1465 = vmatpush1.bf16.msra.mxu0 0
    %1466 = vmatprep.subr.bf16.mxu0 0
    %1467 = vmatpush1.bf16.msra.mxu0 0
    %1468 = vmatprep.subr.bf16.mxu0 0
    %1469 = vmatpush1.bf16.msra.mxu0 0
    %1470 = vmatprep.subr.bf16.mxu0 0
    %1471 = vmatpush1.bf16.msra.mxu0 0
    %1472 = vmatprep.subr.bf16.mxu0 0
    %1473 = vmatpush1.bf16.msra.mxu0 0
    %1474 = vmatprep.subr.bf16.mxu0 0
    %1475 = vmatpush1.bf16.msra.mxu0 0
    %1476 = vmatprep.subr.bf16.mxu0 0
    %1477 = vmatpush1.bf16.msra.mxu0 0
    %1478 = vmatprep.subr.bf16.mxu0 0
    %1479 = vmatpush1.bf16.msra.mxu0 0
    %1480 = vmatprep.mubr.bf16.mxu0 0
    %1481 = vmatmul.mubr.bf16.gmra.mrb[0].mxu0 %v1446
    %v1482 = vpop.f32.mrb[0].mxu0
    %v1483 = vadd.f32 0.0, %v1482
    %v1484 = vpop.f32.mrb[0].mxu0
    %v1485 = vpop.f32.mrb[0].mxu0
    %v1486 = vadd.f32 0.0, %v1485
    %v1487 = vpop.f32.mrb[0].mxu0
    %1488 = vmatprep.mubr.bf16.mxu0 0
    %1489 = vmatmul.mubr.bf16.gmra.mrb[0].mxu0 %v1447
    %v1490 = vpop.f32.mrb[0].mxu0
    %v1491 = vadd.f32 0.0, %v1490
    %v1492 = vpop.f32.mrb[0].mxu0
    %v1493 = vpop.f32.mrb[0].mxu0
    %v1494 = vadd.f32 0.0, %v1493
    %v1495 = vpop.f32.mrb[0].mxu0
    %1496 = vdwg.mxu0
    %v1497 = vsub.f32 %v1442, %v1483
    %v1498 = vsub.f32 %v1443, %v1486
    %v1499 = vsub.f32 %v1444, %v1491
    %v1500 = vsub.f32 %v1445, %v1494
    %v1501 = vmul.f32 %v1497, %v1497
    %v1502 = vmul.f32 %v1498, %v1498
    %v1503 = vmul.f32 %v1499, %v1499
    %v1504 = vmul.f32 %v1500, %v1500
    %v1505 = vpack.c.bf16 %v1502, %v1501
    %v1506 = vpack.c.bf16 %v1504, %v1503
    %1507 = vmatprep.subr.bf16.mxu0 0
    %1508 = vmatpush1.bf16.msra.mxu0 %v105
    %1509 = vmatprep.subr.bf16.mxu0 0
    %1510 = vmatpush1.bf16.msra.mxu0 %v106
    %1511 = vmatprep.subr.bf16.mxu0 0
    %1512 = vmatpush1.bf16.msra.mxu0 %v107
    %1513 = vmatprep.subr.bf16.mxu0 0
    %1514 = vmatpush1.bf16.msra.mxu0 %v108
    %1515 = vmatprep.subr.bf16.mxu0 0
    %1516 = vmatpush1.bf16.msra.mxu0 %v109
    %1517 = vmatprep.subr.bf16.mxu0 0
    %1518 = vmatpush1.bf16.msra.mxu0 %v110
    %1519 = vmatprep.subr.bf16.mxu0 0
    %1520 = vmatpush1.bf16.msra.mxu0 %v111
    %1521 = vmatprep.subr.bf16.mxu0 0
    %1522 = vmatpush1.bf16.msra.mxu0 %v112
    %1523 = vmatprep.subr.bf16.mxu0 0
    %1524 = vmatpush1.bf16.msra.mxu0 0
    %1525 = vmatprep.subr.bf16.mxu0 0
    %1526 = vmatpush1.bf16.msra.mxu0 0
    %1527 = vmatprep.subr.bf16.mxu0 0
    %1528 = vmatpush1.bf16.msra.mxu0 0
    %1529 = vmatprep.subr.bf16.mxu0 0
    %1530 = vmatpush1.bf16.msra.mxu0 0
    %1531 = vmatprep.subr.bf16.mxu0 0
    %1532 = vmatpush1.bf16.msra.mxu0 0
    %1533 = vmatprep.subr.bf16.mxu0 0
    %1534 = vmatpush1.bf16.msra.mxu0 0
    %1535 = vmatprep.subr.bf16.mxu0 0
    %1536 = vmatpush1.bf16.msra.mxu0 0
    %1537 = vmatprep.subr.bf16.mxu0 0
    %1538 = vmatpush1.bf16.msra.mxu0 0
    %1539 = vmatprep.mubr.bf16.mxu0 0
    %1540 = vmatmul.mubr.bf16.gmra.mrb[0].mxu0 %v1505
    %v1541 = vpop.f32.mrb[0].mxu0
    %v1542 = vadd.f32 1e-05, %v1541
    %v1543 = vpop.f32.mrb[0].mxu0
    %v1544 = vpop.f32.mrb[0].mxu0
    %v1545 = vadd.f32 1e-05, %v1544
    %v1546 = vpop.f32.mrb[0].mxu0
    %1547 = vmatprep.mubr.bf16.mxu0 0
    %1548 = vmatmul.mubr.bf16.gmra.mrb[0].mxu0 %v1506
    %v1549 = vpop.f32.mrb[0].mxu0
    %v1550 = vadd.f32 1e-05, %v1549
    %v1551 = vpop.f32.mrb[0].mxu0
    %v1552 = vpop.f32.mrb[0].mxu0
    %v1553 = vadd.f32 1e-05, %v1552
    %v1554 = vpop.f32.mrb[0].mxu0
    %1555 = vdwg.mxu0
    %v1556 = vrsqrt.pop %v1542
    %v1557 = vrsqrt.pop %v1545
    %v1558 = vrsqrt.pop %v1550
    %v1559 = vrsqrt.pop %v1553
    %v1560 = vmul.f32 %v1497, %v1556
    %v1561 = vmul.f32 %v1498, %v1557
    %v1562 = vmul.f32 %v1499, %v1558
    %v1563 = vmul.f32 %v1500, %v1559
    %v1564 = vpack.c.bf16 %v1561, %v1560
    %v1565 = vpack.c.bf16 %v1563, %v1562
    %s1566 = scalar_lea.vmem %s5, 256
    %v1567 = vld [vmem:[%s1566] sm:$0xff]
    %v1568 = vld [vmem:[%s1566 + $0x8] sm:$0xff]
    %v1569 = vld [vmem:[%s1566 + $0x10] sm:$0xff]
    %v1570 = vld [vmem:[%s1566 + $0x18] sm:$0xff]
    %v1571 = vld [vmem:[%s1566 + $0x20] sm:$0xff]
    %v1572 = vld [vmem:[%s1566 + $0x28] sm:$0xff]
    %v1573 = vld [vmem:[%s1566 + $0x30] sm:$0xff]
    %v1574 = vld [vmem:[%s1566 + $0x38] sm:$0xff]
    %v1575 = vld [vmem:[%s1566 + $0x40] sm:$0xff]
    %v1576 = vld [vmem:[%s1566 + $0x48] sm:$0xff]
    %v1577 = vld [vmem:[%s1566 + $0x50] sm:$0xff]
    %v1578 = vld [vmem:[%s1566 + $0x58] sm:$0xff]
    %v1579 = vld [vmem:[%s1566 + $0x60] sm:$0xff]
    %v1580 = vld [vmem:[%s1566 + $0x68] sm:$0xff]
    %v1581 = vld [vmem:[%s1566 + $0x70] sm:$0xff]
    %v1582 = vld [vmem:[%s1566 + $0x78] sm:$0xff]
    %v1583 = vld [vmem:[%s1566 + $0x80] sm:$0xff]
    %v1584 = vld [vmem:[%s1566 + $0x88] sm:$0xff]
    %v1585 = vld [vmem:[%s1566 + $0x90] sm:$0xff]
    %v1586 = vld [vmem:[%s1566 + $0x98] sm:$0xff]
    %v1587 = vld [vmem:[%s1566 + $0xa0] sm:$0xff]
    %v1588 = vld [vmem:[%s1566 + $0xa8] sm:$0xff]
    %v1589 = vld [vmem:[%s1566 + $0xb0] sm:$0xff]
    %v1590 = vld [vmem:[%s1566 + $0xb8] sm:$0xff]
    %v1591 = vld [vmem:[%s1566 + $0xc0] sm:$0xff]
    %v1592 = vld [vmem:[%s1566 + $0xc8] sm:$0xff]
    %v1593 = vld [vmem:[%s1566 + $0xd0] sm:$0xff]
    %v1594 = vld [vmem:[%s1566 + $0xd8] sm:$0xff]
    %v1595 = vld [vmem:[%s1566 + $0xe0] sm:$0xff]
    %v1596 = vld [vmem:[%s1566 + $0xe8] sm:$0xff]
    %v1597 = vld [vmem:[%s1566 + $0xf0] sm:$0xff]
    %v1598 = vld [vmem:[%s1566 + $0xf8] sm:$0xff]
    %s1599 = scalar_lea.vmem %s6, 4
    %v1600 = vld [vmem:[%s1599] sm:$0xf]
    %v1602 = vlaneseq
    %v1603 = vshrl.u32 %v1602, 7
    %v1604 = vsub.s32 0, %v1603
    %v1605 = vrot.slane %v1600, %v1604
    %v1606 = vlaneseq
    %v1607 = vshrl.u32 %v1606, 7
    %v1608 = vsub.s32 1, %v1607
    %v1609 = vrot.slane %v1600, %v1608
    %v1610 = vlaneseq
    %v1611 = vshrl.u32 %v1610, 7
    %v1612 = vsub.s32 2, %v1611
    %v1613 = vrot.slane %v1600, %v1612
    %v1614 = vlaneseq
    %v1615 = vshrl.u32 %v1614, 7
    %v1616 = vsub.s32 3, %v1615
    %v1617 = vrot.slane %v1600, %v1616
    %v1654 = vunpack.c.l.b16 %v1567
    %v1655 = vunpack.c.h.b16 %v1567
    %v1656 = vunpack.c.l.b16 %v1568
    %v1657 = vunpack.c.h.b16 %v1568
    %v1658 = vunpack.c.l.b16 %v1569
    %v1659 = vunpack.c.h.b16 %v1569
    %v1660 = vunpack.c.l.b16 %v1570
    %v1661 = vunpack.c.h.b16 %v1570
    %v1662 = vunpack.c.l.b16 %v1571
    %v1663 = vunpack.c.h.b16 %v1571
    %v1664 = vunpack.c.l.b16 %v1572
    %v1665 = vunpack.c.h.b16 %v1572
    %v1666 = vunpack.c.l.b16 %v1573
    %v1667 = vunpack.c.h.b16 %v1573
    %v1668 = vunpack.c.l.b16 %v1574
    %v1669 = vunpack.c.h.b16 %v1574
    %v1670 = vunpack.c.l.b16 %v1575
    %v1671 = vunpack.c.h.b16 %v1575
    %v1672 = vunpack.c.l.b16 %v1576
    %v1673 = vunpack.c.h.b16 %v1576
    %v1674 = vunpack.c.l.b16 %v1577
    %v1675 = vunpack.c.h.b16 %v1577
    %v1676 = vunpack.c.l.b16 %v1578
    %v1677 = vunpack.c.h.b16 %v1578
    %v1678 = vunpack.c.l.b16 %v1579
    %v1679 = vunpack.c.h.b16 %v1579
    %v1680 = vunpack.c.l.b16 %v1580
    %v1681 = vunpack.c.h.b16 %v1580
    %v1682 = vunpack.c.l.b16 %v1581
    %v1683 = vunpack.c.h.b16 %v1581
    %v1684 = vunpack.c.l.b16 %v1582
    %v1685 = vunpack.c.h.b16 %v1582
    %v1686 = vunpack.c.l.b16 %v1583
    %v1687 = vunpack.c.h.b16 %v1583
    %v1688 = vunpack.c.l.b16 %v1584
    %v1689 = vunpack.c.h.b16 %v1584
    %v1690 = vunpack.c.l.b16 %v1585
    %v1691 = vunpack.c.h.b16 %v1585
    %v1692 = vunpack.c.l.b16 %v1586
    %v1693 = vunpack.c.h.b16 %v1586
    %v1694 = vunpack.c.l.b16 %v1587
    %v1695 = vunpack.c.h.b16 %v1587
    %v1696 = vunpack.c.l.b16 %v1588
    %v1697 = vunpack.c.h.b16 %v1588
    %v1698 = vunpack.c.l.b16 %v1589
    %v1699 = vunpack.c.h.b16 %v1589
    %v1700 = vunpack.c.l.b16 %v1590
    %v1701 = vunpack.c.h.b16 %v1590
    %v1702 = vunpack.c.l.b16 %v1591
    %v1703 = vunpack.c.h.b16 %v1591
    %v1704 = vunpack.c.l.b16 %v1592
    %v1705 = vunpack.c.h.b16 %v1592
    %v1706 = vunpack.c.l.b16 %v1593
    %v1707 = vunpack.c.h.b16 %v1593
    %v1708 = vunpack.c.l.b16 %v1594
    %v1709 = vunpack.c.h.b16 %v1594
    %v1710 = vunpack.c.l.b16 %v1595
    %v1711 = vunpack.c.h.b16 %v1595
    %v1712 = vunpack.c.l.b16 %v1596
    %v1713 = vunpack.c.h.b16 %v1596
    %v1714 = vunpack.c.l.b16 %v1597
    %v1715 = vunpack.c.h.b16 %v1597
    %v1716 = vunpack.c.l.b16 %v1598
    %v1717 = vunpack.c.h.b16 %v1598
    %v1718 = vpack.c.b16 %v1658, %v1654
    %v1719 = vpack.c.b16 %v1659, %v1655
    %v1720 = vpack.c.b16 %v1660, %v1656
    %v1721 = vpack.c.b16 %v1661, %v1657
    %v1722 = vpack.c.b16 %v1666, %v1662
    %v1723 = vpack.c.b16 %v1667, %v1663
    %v1724 = vpack.c.b16 %v1668, %v1664
    %v1725 = vpack.c.b16 %v1669, %v1665
    %v1726 = vpack.c.b16 %v1674, %v1670
    %v1727 = vpack.c.b16 %v1675, %v1671
    %v1728 = vpack.c.b16 %v1676, %v1672
    %v1729 = vpack.c.b16 %v1677, %v1673
    %v1730 = vpack.c.b16 %v1682, %v1678
    %v1731 = vpack.c.b16 %v1683, %v1679
    %v1732 = vpack.c.b16 %v1684, %v1680
    %v1733 = vpack.c.b16 %v1685, %v1681
    %v1734 = vpack.c.b16 %v1690, %v1686
    %v1735 = vpack.c.b16 %v1691, %v1687
    %v1736 = vpack.c.b16 %v1692, %v1688
    %v1737 = vpack.c.b16 %v1693, %v1689
    %v1738 = vpack.c.b16 %v1698, %v1694
    %v1739 = vpack.c.b16 %v1699, %v1695
    %v1740 = vpack.c.b16 %v1700, %v1696
    %v1741 = vpack.c.b16 %v1701, %v1697
    %v1742 = vpack.c.b16 %v1706, %v1702
    %v1743 = vpack.c.b16 %v1707, %v1703
    %v1744 = vpack.c.b16 %v1708, %v1704
    %v1745 = vpack.c.b16 %v1709, %v1705
    %v1746 = vpack.c.b16 %v1714, %v1710
    %v1747 = vpack.c.b16 %v1715, %v1711
    %v1748 = vpack.c.b16 %v1716, %v1712
    %v1749 = vpack.c.b16 %v1717, %v1713
    %1782 = vmatprep.subr.bf16.mxu0 %v1719
    %1783 = vmatpush1.bf16.msra.mxu0 %v1718
    %1784 = vmatprep.subr.bf16.mxu0 %v1723
    %1785 = vmatpush1.bf16.msra.mxu0 %v1722
    %1786 = vmatprep.subr.bf16.mxu0 %v1727
    %1787 = vmatpush1.bf16.msra.mxu0 %v1726
    %1788 = vmatprep.subr.bf16.mxu0 %v1731
    %1789 = vmatpush1.bf16.msra.mxu0 %v1730
    %1790 = vmatprep.subr.bf16.mxu0 %v1735
    %1791 = vmatpush1.bf16.msra.mxu0 %v1734
    %1792 = vmatprep.subr.bf16.mxu0 %v1739
    %1793 = vmatpush1.bf16.msra.mxu0 %v1738
    %1794 = vmatprep.subr.bf16.mxu0 %v1743
    %1795 = vmatpush1.bf16.msra.mxu0 %v1742
    %1796 = vmatprep.subr.bf16.mxu0 %v1747
    %1797 = vmatpush1.bf16.msra.mxu0 %v1746
    %1798 = vmatprep.subr.bf16.mxu0 0
    %1799 = vmatpush1.bf16.msra.mxu0 0
    %1800 = vmatprep.subr.bf16.mxu0 0
    %1801 = vmatpush1.bf16.msra.mxu0 0
    %1802 = vmatprep.subr.bf16.mxu0 0
    %1803 = vmatpush1.bf16.msra.mxu0 0
    %1804 = vmatprep.subr.bf16.mxu0 0
    %1805 = vmatpush1.bf16.msra.mxu0 0
    %1806 = vmatprep.subr.bf16.mxu0 0
    %1807 = vmatpush1.bf16.msra.mxu0 0
    %1808 = vmatprep.subr.bf16.mxu0 0
    %1809 = vmatpush1.bf16.msra.mxu0 0
    %1810 = vmatprep.subr.bf16.mxu0 0
    %1811 = vmatpush1.bf16.msra.mxu0 0
    %1812 = vmatprep.subr.bf16.mxu0 0
    %1813 = vmatpush1.bf16.msra.mxu0 0
    %1814 = vmatprep.mubr.bf16.mxu0 0
    %1815 = vmatmul.mubr.bf16.gmra.mrb[0].mxu0 %v1564
    %v1816 = vpop.f32.mrb[0].mxu0
    %v1817 = vadd.f32 %v1605, %v1816
    %v1818 = vpop.f32.mrb[0].mxu0
    %v1819 = vadd.f32 %v1609, %v1818
    %v1820 = vpop.f32.mrb[0].mxu0
    %v1821 = vadd.f32 %v1605, %v1820
    %v1822 = vpop.f32.mrb[0].mxu0
    %v1823 = vadd.f32 %v1609, %v1822
    %1824 = vmatprep.mubr.bf16.mxu0 0
    %1825 = vmatmul.mubr.bf16.gmra.mrb[0].mxu0 %v1565
    %v1826 = vpop.f32.mrb[0].mxu0
    %v1827 = vadd.f32 %v1605, %v1826
    %v1828 = vpop.f32.mrb[0].mxu0
    %v1829 = vadd.f32 %v1609, %v1828
    %v1830 = vpop.f32.mrb[0].mxu0
    %v1831 = vadd.f32 %v1605, %v1830
    %v1832 = vpop.f32.mrb[0].mxu0
    %v1833 = vadd.f32 %v1609, %v1832
    %1834 = vdwg.mxu0
    %1835 = vmatprep.subr.bf16.mxu0 %v1721
    %1836 = vmatpush1.bf16.msra.mxu0 %v1720
    %1837 = vmatprep.subr.bf16.mxu0 %v1725
    %1838 = vmatpush1.bf16.msra.mxu0 %v1724
    %1839 = vmatprep.subr.bf16.mxu0 %v1729
    %1840 = vmatpush1.bf16.msra.mxu0 %v1728
    %1841 = vmatprep.subr.bf16.mxu0 %v1733
    %1842 = vmatpush1.bf16.msra.mxu0 %v1732
    %1843 = vmatprep.subr.bf16.mxu0 %v1737
    %1844 = vmatpush1.bf16.msra.mxu0 %v1736
    %1845 = vmatprep.subr.bf16.mxu0 %v1741
    %1846 = vmatpush1.bf16.msra.mxu0 %v1740
    %1847 = vmatprep.subr.bf16.mxu0 %v1745
    %1848 = vmatpush1.bf16.msra.mxu0 %v1744
    %1849 = vmatprep.subr.bf16.mxu0 %v1749
    %1850 = vmatpush1.bf16.msra.mxu0 %v1748
    %1851 = vmatprep.subr.bf16.mxu0 0
    %1852 = vmatpush1.bf16.msra.mxu0 0
    %1853 = vmatprep.subr.bf16.mxu0 0
    %1854 = vmatpush1.bf16.msra.mxu0 0
    %1855 = vmatprep.subr.bf16.mxu0 0
    %1856 = vmatpush1.bf16.msra.mxu0 0
    %1857 = vmatprep.subr.bf16.mxu0 0
    %1858 = vmatpush1.bf16.msra.mxu0 0
    %1859 = vmatprep.subr.bf16.mxu0 0
    %1860 = vmatpush1.bf16.msra.mxu0 0
    %1861 = vmatprep.subr.bf16.mxu0 0
    %1862 = vmatpush1.bf16.msra.mxu0 0
    %1863 = vmatprep.subr.bf16.mxu0 0
    %1864 = vmatpush1.bf16.msra.mxu0 0
    %1865 = vmatprep.subr.bf16.mxu0 0
    %1866 = vmatpush1.bf16.msra.mxu0 0
    %1867 = vmatprep.mubr.bf16.mxu0 0
    %1868 = vmatmul.mubr.bf16.gmra.mrb[0].mxu0 %v1564
    %v1869 = vpop.f32.mrb[0].mxu0
    %v1870 = vadd.f32 %v1613, %v1869
    %v1871 = vpop.f32.mrb[0].mxu0
    %v1872 = vadd.f32 %v1617, %v1871
    %v1873 = vpop.f32.mrb[0].mxu0
    %v1874 = vadd.f32 %v1613, %v1873
    %v1875 = vpop.f32.mrb[0].mxu0
    %v1876 = vadd.f32 %v1617, %v1875
    %1877 = vmatprep.mubr.bf16.mxu0 0
    %1878 = vmatmul.mubr.bf16.gmra.mrb[0].mxu0 %v1565
    %v1879 = vpop.f32.mrb[0].mxu0
    %v1880 = vadd.f32 %v1613, %v1879
    %v1881 = vpop.f32.mrb[0].mxu0
    %v1882 = vadd.f32 %v1617, %v1881
    %v1883 = vpop.f32.mrb[0].mxu0
    %v1884 = vadd.f32 %v1613, %v1883
    %v1885 = vpop.f32.mrb[0].mxu0
    %v1886 = vadd.f32 %v1617, %v1885
    %1887 = vdwg.mxu0
    %v1888 = vmul.f32 %v1817, %v1817
    %v1889 = vmul.f32 %v1819, %v1819
    %v1890 = vmul.f32 %v1870, %v1870
    %v1891 = vmul.f32 %v1872, %v1872
    %v1892 = vmul.f32 %v1821, %v1821
    %v1893 = vmul.f32 %v1823, %v1823
    %v1894 = vmul.f32 %v1874, %v1874
    %v1895 = vmul.f32 %v1876, %v1876
    %v1896 = vmul.f32 %v1827, %v1827
    %v1897 = vmul.f32 %v1829, %v1829
    %v1898 = vmul.f32 %v1880, %v1880
    %v1899 = vmul.f32 %v1882, %v1882
    %v1900 = vmul.f32 %v1831, %v1831
    %v1901 = vmul.f32 %v1833, %v1833
    %v1902 = vmul.f32 %v1884, %v1884
    %v1903 = vmul.f32 %v1886, %v1886
    %v1904 = vmul.f32 %v1817, %v1888
    %v1905 = vmul.f32 %v1819, %v1889
    %v1906 = vmul.f32 %v1870, %v1890
    %v1907 = vmul.f32 %v1872, %v1891
    %v1908 = vmul.f32 %v1821, %v1892
    %v1909 = vmul.f32 %v1823, %v1893
    %v1910 = vmul.f32 %v1874, %v1894
    %v1911 = vmul.f32 %v1876, %v1895
    %v1912 = vmul.f32 %v1827, %v1896
    %v1913 = vmul.f32 %v1829, %v1897
    %v1914 = vmul.f32 %v1880, %v1898
    %v1915 = vmul.f32 %v1882, %v1899
    %v1916 = vmul.f32 %v1831, %v1900
    %v1917 = vmul.f32 %v1833, %v1901
    %v1918 = vmul.f32 %v1884, %v1902
    %v1919 = vmul.f32 %v1886, %v1903
    %v1920 = vmul.f32 %v1904, 0.044715
    %v1921 = vmul.f32 %v1905, 0.044715
    %v1922 = vmul.f32 %v1906, 0.044715
    %v1923 = vmul.f32 %v1907, 0.044715
    %v1924 = vmul.f32 %v1908, 0.044715
    %v1925 = vmul.f32 %v1909, 0.044715
    %v1926 = vmul.f32 %v1910, 0.044715
    %v1927 = vmul.f32 %v1911, 0.044715
    %v1928 = vmul.f32 %v1912, 0.044715
    %v1929 = vmul.f32 %v1913, 0.044715
    %v1930 = vmul.f32 %v1914, 0.044715
    %v1931 = vmul.f32 %v1915, 0.044715
    %v1932 = vmul.f32 %v1916, 0.044715
    %v1933 = vmul.f32 %v1917, 0.044715
    %v1934 = vmul.f32 %v1918, 0.044715
    %v1935 = vmul.f32 %v1919, 0.044715
    %v1936 = vadd.f32 %v1817, %v1920
    %v1937 = vadd.f32 %v1819, %v1921
    %v1938 = vadd.f32 %v1870, %v1922
    %v1939 = vadd.f32 %v1872, %v1923
    %v1940 = vadd.f32 %v1821, %v1924
    %v1941 = vadd.f32 %v1823, %v1925
    %v1942 = vadd.f32 %v1874, %v1926
    %v1943 = vadd.f32 %v1876, %v1927
    %v1944 = vadd.f32 %v1827, %v1928
    %v1945 = vadd.f32 %v1829, %v1929
    %v1946 = vadd.f32 %v1880, %v1930
    %v1947 = vadd.f32 %v1882, %v1931
    %v1948 = vadd.f32 %v1831, %v1932
    %v1949 = vadd.f32 %v1833, %v1933
    %v1950 = vadd.f32 %v1884, %v1934
    %v1951 = vadd.f32 %v1886, %v1935
    %v1952 = vmul.f32 %v1936, 0.7978846
    %v1953 = vmul.f32 %v1937, 0.7978846
    %v1954 = vmul.f32 %v1938, 0.7978846
    %v1955 = vmul.f32 %v1939, 0.7978846
    %v1956 = vmul.f32 %v1940, 0.7978846
    %v1957 = vmul.f32 %v1941, 0.7978846
    %v1958 = vmul.f32 %v1942, 0.7978846
    %v1959 = vmul.f32 %v1943, 0.7978846
    %v1960 = vmul.f32 %v1944, 0.7978846
    %v1961 = vmul.f32 %v1945, 0.7978846
    %v1962 = vmul.f32 %v1946, 0.7978846
    %v1963 = vmul.f32 %v1947, 0.7978846
    %v1964 = vmul.f32 %v1948, 0.7978846
    %v1965 = vmul.f32 %v1949, 0.7978846
    %v1966 = vmul.f32 %v1950, 0.7978846
    %v1967 = vmul.f32 %v1951, 0.7978846
    %v1968 = vtanh.pop %v1952
    %v1969 = vtanh.pop %v1953
    %v1970 = vtanh.pop %v1954
    %v1971 = vtanh.pop %v1955
    %v1972 = vtanh.pop %v1956
    %v1973 = vtanh.pop %v1957
    %v1974 = vtanh.pop %v1958
    %v1975 = vtanh.pop %v1959
    %v1976 = vtanh.pop %v1960
    %v1977 = vtanh.pop %v1961
    %v1978 = vtanh.pop %v1962
    %v1979 = vtanh.pop %v1963
    %v1980 = vtanh.pop %v1964
    %v1981 = vtanh.pop %v1965
    %v1982 = vtanh.pop %v1966
    %v1983 = vtanh.pop %v1967
    %v1984 = vadd.f32 %v1968, 1.0
    %v1985 = vadd.f32 %v1969, 1.0
    %v1986 = vadd.f32 %v1970, 1.0
    %v1987 = vadd.f32 %v1971, 1.0
    %v1988 = vadd.f32 %v1972, 1.0
    %v1989 = vadd.f32 %v1973, 1.0
    %v1990 = vadd.f32 %v1974, 1.0
    %v1991 = vadd.f32 %v1975, 1.0
    %v1992 = vadd.f32 %v1976, 1.0
    %v1993 = vadd.f32 %v1977, 1.0
    %v1994 = vadd.f32 %v1978, 1.0
    %v1995 = vadd.f32 %v1979, 1.0
    %v1996 = vadd.f32 %v1980, 1.0
    %v1997 = vadd.f32 %v1981, 1.0
    %v1998 = vadd.f32 %v1982, 1.0
    %v1999 = vadd.f32 %v1983, 1.0
    %v2000 = vmul.f32 %v1984, 0.5
    %v2001 = vmul.f32 %v1985, 0.5
    %v2002 = vmul.f32 %v1986, 0.5
    %v2003 = vmul.f32 %v1987, 0.5
    %v2004 = vmul.f32 %v1988, 0.5
    %v2005 = vmul.f32 %v1989, 0.5
    %v2006 = vmul.f32 %v1990, 0.5
    %v2007 = vmul.f32 %v1991, 0.5
    %v2008 = vmul.f32 %v1992, 0.5
    %v2009 = vmul.f32 %v1993, 0.5
    %v2010 = vmul.f32 %v1994, 0.5
    %v2011 = vmul.f32 %v1995, 0.5
    %v2012 = vmul.f32 %v1996, 0.5
    %v2013 = vmul.f32 %v1997, 0.5
    %v2014 = vmul.f32 %v1998, 0.5
    %v2015 = vmul.f32 %v1999, 0.5
    %v2016 = vmul.f32 %v1817, %v2000
    %v2017 = vmul.f32 %v1819, %v2001
    %v2018 = vmul.f32 %v1870, %v2002
    %v2019 = vmul.f32 %v1872, %v2003
    %v2020 = vmul.f32 %v1821, %v2004
    %v2021 = vmul.f32 %v1823, %v2005
    %v2022 = vmul.f32 %v1874, %v2006
    %v2023 = vmul.f32 %v1876, %v2007
    %v2024 = vmul.f32 %v1827, %v2008
    %v2025 = vmul.f32 %v1829, %v2009
    %v2026 = vmul.f32 %v1880, %v2010
    %v2027 = vmul.f32 %v1882, %v2011
    %v2028 = vmul.f32 %v1831, %v2012
    %v2029 = vmul.f32 %v1833, %v2013
    %v2030 = vmul.f32 %v1884, %v2014
    %v2031 = vmul.f32 %v1886, %v2015
    %v2032 = vpack.c.bf16 %v2020, %v2016
    %v2033 = vpack.c.bf16 %v2021, %v2017
    %v2034 = vpack.c.bf16 %v2022, %v2018
    %v2035 = vpack.c.bf16 %v2023, %v2019
    %v2036 = vpack.c.bf16 %v2028, %v2024
    %v2037 = vpack.c.bf16 %v2029, %v2025
    %v2038 = vpack.c.bf16 %v2030, %v2026
    %v2039 = vpack.c.bf16 %v2031, %v2027
    %s2040 = scalar_lea.vmem [#allocation2], 256
    %v2041 = vld [vmem:[%s2040] sm:$0xf]
    %v2042 = vld [vmem:[%s2040 + $0x4] sm:$0xf]
    %v2043 = vld [vmem:[%s2040 + $0x8] sm:$0xf]
    %v2044 = vld [vmem:[%s2040 + $0xc] sm:$0xf]
    %v2045 = vld [vmem:[%s2040 + $0x10] sm:$0xf]
    %v2046 = vld [vmem:[%s2040 + $0x14] sm:$0xf]
    %v2047 = vld [vmem:[%s2040 + $0x18] sm:$0xf]
    %v2048 = vld [vmem:[%s2040 + $0x1c] sm:$0xf]
    %v2049 = vld [vmem:[%s2040 + $0x20] sm:$0xf]
    %v2050 = vld [vmem:[%s2040 + $0x24] sm:$0xf]
    %v2051 = vld [vmem:[%s2040 + $0x28] sm:$0xf]
    %v2052 = vld [vmem:[%s2040 + $0x2c] sm:$0xf]
    %v2053 = vld [vmem:[%s2040 + $0x30] sm:$0xf]
    %v2054 = vld [vmem:[%s2040 + $0x34] sm:$0xf]
    %v2055 = vld [vmem:[%s2040 + $0x38] sm:$0xf]
    %v2056 = vld [vmem:[%s2040 + $0x3c] sm:$0xf]
    %v2057 = vld [vmem:[%s2040 + $0x40] sm:$0xf]
    %v2058 = vld [vmem:[%s2040 + $0x44] sm:$0xf]
    %v2059 = vld [vmem:[%s2040 + $0x48] sm:$0xf]
    %v2060 = vld [vmem:[%s2040 + $0x4c] sm:$0xf]
    %v2061 = vld [vmem:[%s2040 + $0x50] sm:$0xf]
    %v2062 = vld [vmem:[%s2040 + $0x54] sm:$0xf]
    %v2063 = vld [vmem:[%s2040 + $0x58] sm:$0xf]
    %v2064 = vld [vmem:[%s2040 + $0x5c] sm:$0xf]
    %v2065 = vld [vmem:[%s2040 + $0x60] sm:$0xf]
    %v2066 = vld [vmem:[%s2040 + $0x64] sm:$0xf]
    %v2067 = vld [vmem:[%s2040 + $0x68] sm:$0xf]
    %v2068 = vld [vmem:[%s2040 + $0x6c] sm:$0xf]
    %v2069 = vld [vmem:[%s2040 + $0x70] sm:$0xf]
    %v2070 = vld [vmem:[%s2040 + $0x74] sm:$0xf]
    %v2071 = vld [vmem:[%s2040 + $0x78] sm:$0xf]
    %v2072 = vld [vmem:[%s2040 + $0x7c] sm:$0xf]
    %v2073 = vld [vmem:[%s2040 + $0x80] sm:$0xf]
    %v2074 = vld [vmem:[%s2040 + $0x84] sm:$0xf]
    %v2075 = vld [vmem:[%s2040 + $0x88] sm:$0xf]
    %v2076 = vld [vmem:[%s2040 + $0x8c] sm:$0xf]
    %v2077 = vld [vmem:[%s2040 + $0x90] sm:$0xf]
    %v2078 = vld [vmem:[%s2040 + $0x94] sm:$0xf]
    %v2079 = vld [vmem:[%s2040 + $0x98] sm:$0xf]
    %v2080 = vld [vmem:[%s2040 + $0x9c] sm:$0xf]
    %v2081 = vld [vmem:[%s2040 + $0xa0] sm:$0xf]
    %v2082 = vld [vmem:[%s2040 + $0xa4] sm:$0xf]
    %v2083 = vld [vmem:[%s2040 + $0xa8] sm:$0xf]
    %v2084 = vld [vmem:[%s2040 + $0xac] sm:$0xf]
    %v2085 = vld [vmem:[%s2040 + $0xb0] sm:$0xf]
    %v2086 = vld [vmem:[%s2040 + $0xb4] sm:$0xf]
    %v2087 = vld [vmem:[%s2040 + $0xb8] sm:$0xf]
    %v2088 = vld [vmem:[%s2040 + $0xbc] sm:$0xf]
    %v2089 = vld [vmem:[%s2040 + $0xc0] sm:$0xf]
    %v2090 = vld [vmem:[%s2040 + $0xc4] sm:$0xf]
    %v2091 = vld [vmem:[%s2040 + $0xc8] sm:$0xf]
    %v2092 = vld [vmem:[%s2040 + $0xcc] sm:$0xf]
    %v2093 = vld [vmem:[%s2040 + $0xd0] sm:$0xf]
    %v2094 = vld [vmem:[%s2040 + $0xd4] sm:$0xf]
    %v2095 = vld [vmem:[%s2040 + $0xd8] sm:$0xf]
    %v2096 = vld [vmem:[%s2040 + $0xdc] sm:$0xf]
    %v2097 = vld [vmem:[%s2040 + $0xe0] sm:$0xf]
    %v2098 = vld [vmem:[%s2040 + $0xe4] sm:$0xf]
    %v2099 = vld [vmem:[%s2040 + $0xe8] sm:$0xf]
    %v2100 = vld [vmem:[%s2040 + $0xec] sm:$0xf]
    %v2101 = vld [vmem:[%s2040 + $0xf0] sm:$0xf]
    %v2102 = vld [vmem:[%s2040 + $0xf4] sm:$0xf]
    %v2103 = vld [vmem:[%s2040 + $0xf8] sm:$0xf]
    %v2104 = vld [vmem:[%s2040 + $0xfc] sm:$0xf]
    %s2105 = scalar_lea.vmem %s8, 1
    %v2106 = vld [vmem:[%s2105] sm:$0x1]
    %v2108 = vlaneseq
    %v2109 = vshrl.u32 %v2108, 7
    %v2110 = vsub.s32 0, %v2109
    %v2111 = vrot.slane %v2106, %v2110
    %v2177 = vunpack.c.l.b16 %v2041
    %v2178 = vunpack.c.l.b16 %v2042
    %v2179 = vunpack.c.l.b16 %v2043
    %v2180 = vunpack.c.l.b16 %v2044
    %v2181 = vunpack.c.l.b16 %v2045
    %v2182 = vunpack.c.l.b16 %v2046
    %v2183 = vunpack.c.l.b16 %v2047
    %v2184 = vunpack.c.l.b16 %v2048
    %v2185 = vunpack.c.l.b16 %v2049
    %v2186 = vunpack.c.l.b16 %v2050
    %v2187 = vunpack.c.l.b16 %v2051
    %v2188 = vunpack.c.l.b16 %v2052
    %v2189 = vunpack.c.l.b16 %v2053
    %v2190 = vunpack.c.l.b16 %v2054
    %v2191 = vunpack.c.l.b16 %v2055
    %v2192 = vunpack.c.l.b16 %v2056
    %v2193 = vunpack.c.l.b16 %v2057
    %v2194 = vunpack.c.l.b16 %v2058
    %v2195 = vunpack.c.l.b16 %v2059
    %v2196 = vunpack.c.l.b16 %v2060
    %v2197 = vunpack.c.l.b16 %v2061
    %v2198 = vunpack.c.l.b16 %v2062
    %v2199 = vunpack.c.l.b16 %v2063
    %v2200 = vunpack.c.l.b16 %v2064
    %v2201 = vunpack.c.l.b16 %v2065
    %v2202 = vunpack.c.l.b16 %v2066
    %v2203 = vunpack.c.l.b16 %v2067
    %v2204 = vunpack.c.l.b16 %v2068
    %v2205 = vunpack.c.l.b16 %v2069
    %v2206 = vunpack.c.l.b16 %v2070
    %v2207 = vunpack.c.l.b16 %v2071
    %v2208 = vunpack.c.l.b16 %v2072
    %v2209 = vunpack.c.l.b16 %v2073
    %v2210 = vunpack.c.l.b16 %v2074
    %v2211 = vunpack.c.l.b16 %v2075
    %v2212 = vunpack.c.l.b16 %v2076
    %v2213 = vunpack.c.l.b16 %v2077
    %v2214 = vunpack.c.l.b16 %v2078
    %v2215 = vunpack.c.l.b16 %v2079
    %v2216 = vunpack.c.l.b16 %v2080
    %v2217 = vunpack.c.l.b16 %v2081
    %v2218 = vunpack.c.l.b16 %v2082
    %v2219 = vunpack.c.l.b16 %v2083
    %v2220 = vunpack.c.l.b16 %v2084
    %v2221 = vunpack.c.l.b16 %v2085
    %v2222 = vunpack.c.l.b16 %v2086
    %v2223 = vunpack.c.l.b16 %v2087
    %v2224 = vunpack.c.l.b16 %v2088
    %v2225 = vunpack.c.l.b16 %v2089
    %v2226 = vunpack.c.l.b16 %v2090
    %v2227 = vunpack.c.l.b16 %v2091
    %v2228 = vunpack.c.l.b16 %v2092
    %v2229 = vunpack.c.l.b16 %v2093
    %v2230 = vunpack.c.l.b16 %v2094
    %v2231 = vunpack.c.l.b16 %v2095
    %v2232 = vunpack.c.l.b16 %v2096
    %v2233 = vunpack.c.l.b16 %v2097
    %v2234 = vunpack.c.l.b16 %v2098
    %v2235 = vunpack.c.l.b16 %v2099
    %v2236 = vunpack.c.l.b16 %v2100
    %v2237 = vunpack.c.l.b16 %v2101
    %v2238 = vunpack.c.l.b16 %v2102
    %v2239 = vunpack.c.l.b16 %v2103
    %v2240 = vunpack.c.l.b16 %v2104
    %v2241 = vpack.c.b16 %v2178, %v2177
    %v2242 = vpack.c.b16 %v2180, %v2179
    %v2243 = vpack.c.b16 %v2182, %v2181
    %v2244 = vpack.c.b16 %v2184, %v2183
    %v2245 = vpack.c.b16 %v2186, %v2185
    %v2246 = vpack.c.b16 %v2188, %v2187
    %v2247 = vpack.c.b16 %v2190, %v2189
    %v2248 = vpack.c.b16 %v2192, %v2191
    %v2249 = vpack.c.b16 %v2194, %v2193
    %v2250 = vpack.c.b16 %v2196, %v2195
    %v2251 = vpack.c.b16 %v2198, %v2197
    %v2252 = vpack.c.b16 %v2200, %v2199
    %v2253 = vpack.c.b16 %v2202, %v2201
    %v2254 = vpack.c.b16 %v2204, %v2203
    %v2255 = vpack.c.b16 %v2206, %v2205
    %v2256 = vpack.c.b16 %v2208, %v2207
    %v2257 = vpack.c.b16 %v2210, %v2209
    %v2258 = vpack.c.b16 %v2212, %v2211
    %v2259 = vpack.c.b16 %v2214, %v2213
    %v2260 = vpack.c.b16 %v2216, %v2215
    %v2261 = vpack.c.b16 %v2218, %v2217
    %v2262 = vpack.c.b16 %v2220, %v2219
    %v2263 = vpack.c.b16 %v2222, %v2221
    %v2264 = vpack.c.b16 %v2224, %v2223
    %v2265 = vpack.c.b16 %v2226, %v2225
    %v2266 = vpack.c.b16 %v2228, %v2227
    %v2267 = vpack.c.b16 %v2230, %v2229
    %v2268 = vpack.c.b16 %v2232, %v2231
    %v2269 = vpack.c.b16 %v2234, %v2233
    %v2270 = vpack.c.b16 %v2236, %v2235
    %v2271 = vpack.c.b16 %v2238, %v2237
    %v2272 = vpack.c.b16 %v2240, %v2239
    %2305 = vmatprep.subr.bf16.mxu0 0
    %2306 = vmatpush1.bf16.msra.mxu0 %v2241
    %2307 = vmatprep.subr.bf16.mxu0 0
    %2308 = vmatpush1.bf16.msra.mxu0 %v2242
    %2309 = vmatprep.subr.bf16.mxu0 0
    %2310 = vmatpush1.bf16.msra.mxu0 %v2243
    %2311 = vmatprep.subr.bf16.mxu0 0
    %2312 = vmatpush1.bf16.msra.mxu0 %v2244
    %2313 = vmatprep.subr.bf16.mxu0 0
    %2314 = vmatpush1.bf16.msra.mxu0 %v2245
    %2315 = vmatprep.subr.bf16.mxu0 0
    %2316 = vmatpush1.bf16.msra.mxu0 %v2246
    %2317 = vmatprep.subr.bf16.mxu0 0
    %2318 = vmatpush1.bf16.msra.mxu0 %v2247
    %2319 = vmatprep.subr.bf16.mxu0 0
    %2320 = vmatpush1.bf16.msra.mxu0 %v2248
    %2321 = vmatprep.subr.bf16.mxu0 0
    %2322 = vmatpush1.bf16.msra.mxu0 %v2249
    %2323 = vmatprep.subr.bf16.mxu0 0
    %2324 = vmatpush1.bf16.msra.mxu0 %v2250
    %2325 = vmatprep.subr.bf16.mxu0 0
    %2326 = vmatpush1.bf16.msra.mxu0 %v2251
    %2327 = vmatprep.subr.bf16.mxu0 0
    %2328 = vmatpush1.bf16.msra.mxu0 %v2252
    %2329 = vmatprep.subr.bf16.mxu0 0
    %2330 = vmatpush1.bf16.msra.mxu0 %v2253
    %2331 = vmatprep.subr.bf16.mxu0 0
    %2332 = vmatpush1.bf16.msra.mxu0 %v2254
    %2333 = vmatprep.subr.bf16.mxu0 0
    %2334 = vmatpush1.bf16.msra.mxu0 %v2255
    %2335 = vmatprep.subr.bf16.mxu0 0
    %2336 = vmatpush1.bf16.msra.mxu0 %v2256
    %2337 = vmatprep.mubr.bf16.mxu0 %v2033
    %2338 = vmatmul.mubr.bf16.gmra.mrb[0].mxu0 %v2032
    %v2339 = vpop.f32.mrb[0].mxu0
    %v2340 = vadd.f32 %v2111, %v2339
    %v2341 = vpop.f32.mrb[0].mxu0
    %v2342 = vpop.f32.mrb[0].mxu0
    %v2343 = vadd.f32 %v2111, %v2342
    %v2344 = vpop.f32.mrb[0].mxu0
    %2345 = vmatprep.mubr.bf16.mxu0 %v2037
    %2346 = vmatmul.mubr.bf16.gmra.mrb[0].mxu0 %v2036
    %v2347 = vpop.f32.mrb[0].mxu0
    %v2348 = vadd.f32 %v2111, %v2347
    %v2349 = vpop.f32.mrb[0].mxu0
    %v2350 = vpop.f32.mrb[0].mxu0
    %v2351 = vadd.f32 %v2111, %v2350
    %v2352 = vpop.f32.mrb[0].mxu0
    %2353 = vdwg.mxu0
    %2354 = vmatprep.subr.bf16.mxu0 0
    %2355 = vmatpush1.bf16.msra.mxu0 %v2257
    %2356 = vmatprep.subr.bf16.mxu0 0
    %2357 = vmatpush1.bf16.msra.mxu0 %v2258
    %2358 = vmatprep.subr.bf16.mxu0 0
    %2359 = vmatpush1.bf16.msra.mxu0 %v2259
    %2360 = vmatprep.subr.bf16.mxu0 0
    %2361 = vmatpush1.bf16.msra.mxu0 %v2260
    %2362 = vmatprep.subr.bf16.mxu0 0
    %2363 = vmatpush1.bf16.msra.mxu0 %v2261
    %2364 = vmatprep.subr.bf16.mxu0 0
    %2365 = vmatpush1.bf16.msra.mxu0 %v2262
    %2366 = vmatprep.subr.bf16.mxu0 0
    %2367 = vmatpush1.bf16.msra.mxu0 %v2263
    %2368 = vmatprep.subr.bf16.mxu0 0
    %2369 = vmatpush1.bf16.msra.mxu0 %v2264
    %2370 = vmatprep.subr.bf16.mxu0 0
    %2371 = vmatpush1.bf16.msra.mxu0 %v2265
    %2372 = vmatprep.subr.bf16.mxu0 0
    %2373 = vmatpush1.bf16.msra.mxu0 %v2266
    %2374 = vmatprep.subr.bf16.mxu0 0
    %2375 = vmatpush1.bf16.msra.mxu0 %v2267
    %2376 = vmatprep.subr.bf16.mxu0 0
    %2377 = vmatpush1.bf16.msra.mxu0 %v2268
    %2378 = vmatprep.subr.bf16.mxu0 0
    %2379 = vmatpush1.bf16.msra.mxu0 %v2269
    %2380 = vmatprep.subr.bf16.mxu0 0
    %2381 = vmatpush1.bf16.msra.mxu0 %v2270
    %2382 = vmatprep.subr.bf16.mxu0 0
    %2383 = vmatpush1.bf16.msra.mxu0 %v2271
    %2384 = vmatprep.subr.bf16.mxu0 0
    %2385 = vmatpush1.bf16.msra.mxu0 %v2272
    %2386 = vmatprep.mubr.bf16.mxu0 %v2035
    %2387 = vmatmul.mubr.bf16.gmra.mrb[0].mxu0 %v2034
    %v2388 = vpop.f32.mrb[0].mxu0
    %v2389 = vadd.f32 %v2340, %v2388
    %v2390 = vpop.f32.mrb[0].mxu0
    %v2391 = vpop.f32.mrb[0].mxu0
    %v2392 = vadd.f32 %v2343, %v2391
    %v2393 = vpop.f32.mrb[0].mxu0
    %2394 = vmatprep.mubr.bf16.mxu0 %v2039
    %2395 = vmatmul.mubr.bf16.gmra.mrb[0].mxu0 %v2038
    %v2396 = vpop.f32.mrb[0].mxu0
    %v2397 = vadd.f32 %v2348, %v2396
    %v2398 = vpop.f32.mrb[0].mxu0
    %v2399 = vpop.f32.mrb[0].mxu0
    %v2400 = vadd.f32 %v2351, %v2399
    %v2401 = vpop.f32.mrb[0].mxu0
    %2402 = vdwg.mxu0
    %v2403 = vadd.f32 %v1442, %v2389
    %v2404 = vadd.f32 %v1443, %v2392
    %v2405 = vadd.f32 %v1444, %v2397
    %v2406 = vadd.f32 %v1445, %v2400
    %2407 = vst [vmem:[%s9] sm:$0xff] %v2403
    %2408 = vst [vmem:[%s9 + $0x8] sm:$0xff] %v2404
    %2409 = vst [vmem:[%s9 + $0x10] sm:$0xff] %v2405
    %2410 = vst [vmem:[%s9 + $0x18] sm:$0xff] %v2406
    // Predicated region
    $region42: #{basic_layer_forward.1} parent=1 // pred_check
      _
    $region43: #{basic_layer_forward.1} parent=1 // pred_check_branch
      %2412 = sbr.rel (0) target = $region45
    $region44: #{basic_layer_forward.1} parent=1 // pred_region
      _
    $region45: #{basic_layer_forward.1} parent=1 // pred_fallthru
      _
    // Predicated region
    $region46: #{basic_layer_forward.1} parent=1 // pred_check
      _
    $region47: #{basic_layer_forward.1} parent=1 // pred_check_branch
      %2414 = sbr.rel (0) target = $region49
    $region48: #{basic_layer_forward.1} parent=1 // pred_region
      _
    $region49: #{basic_layer_forward.1} parent=1 // pred_fallthru
      _
    %2415 = vsyncpa [#allocation3], 1

</llo_original>
